<compile_context>
chip_gen: v7x
topology: tpu7x:2x2x1
jax: 0.10.0
libtpu: 0.0.40
codegen_flags: <defaults>
</compile_context>

<pallas_src>
import functools

import jax
import jax.numpy as jnp
from jax.experimental import pallas as pl
from jax.experimental.pallas import tpu as pltpu


def _wdsr_kernel(xp_ref, xc_ref, xn_ref, w1_ref, b1_ref, w2_ref, b2_ref,
                 w3_ref, b3_ref, o_ref, *, R, W):
    r = pl.program_id(1)
    n_tiles = pl.num_programs(1)
    HWt = R * W              # output pixels in this tile
    HWe = (R + 2) * W        # extended pixels (1-row halo on each side)

    x_c = xc_ref[0]                                                  # (HWt, C) f32
    x_ext = jnp.concatenate([xp_ref[0], x_c, xn_ref[0]], axis=0)     # (HWe, C) f32

    # conv1: 1x1, C -> C1, + ReLU.  bf16 MXU operands, f32 accumulation; keep
    # h1 live only in bf16 (it is consumed only as an MXU operand).
    h1 = jnp.dot(x_ext.astype(jnp.bfloat16), w1_ref[...],
                 preferred_element_type=jnp.float32) + b1_ref[...]
    h1 = jnp.maximum(h1, 0.0).astype(jnp.bfloat16)                   # (HWe, C1)

    # conv2: 1x1, C1 -> Cm_p (padded channels carry zero weights downstream).
    # Kept in f32 so the horizontal rolls operate on unpacked sublanes.
    h2 = jnp.dot(h1, w2_ref[...],
                 preferred_element_type=jnp.float32) + b2_ref[...]   # (HWe, Cm_p)

    # The halo row indices were clamped at the image border in the index_map;
    # zero them here so the 3x3 SAME zero-padding is reproduced exactly.
    idx = jax.lax.broadcasted_iota(jnp.int32, (HWe, 1), 0)
    halo_ok = ((r > 0) | (idx >= W)) & ((r < n_tiles - 1) | (idx < (R + 1) * W))
    h2 = jnp.where(halo_ok, h2, 0.0)

    # Horizontal taps: roll +-1 along the flattened spatial axis, mask the
    # image's left/right borders (f32), then cast to bf16 and concat once to a
    # 3*Cm_p-lane block.  Rolls across row boundaries land on masked columns.
    col = idx % W
    left = jnp.where(col >= 1, pltpu.roll(h2, 1, 0), 0.0)
    right = jnp.where(col <= W - 2, pltpu.roll(h2, HWe - 1, 0), 0.0)
    h3 = jnp.concatenate([left.astype(jnp.bfloat16),
                          h2.astype(jnp.bfloat16),
                          right.astype(jnp.bfloat16)], axis=1)       # (HWe, 3*Cm_p)

    # conv3: 3x3 as three accumulating K=3*Cm_p matmuls, one per kernel row.
    # Vertical taps are static sublane slices of the halo-extended block.
    acc = b3_ref[...] + jnp.dot(h3[0:HWt], w3_ref[0],
                                preferred_element_type=jnp.float32)
    acc = acc + jnp.dot(h3[W:W + HWt], w3_ref[1],
                        preferred_element_type=jnp.float32)
    acc = acc + jnp.dot(h3[2 * W:2 * W + HWt], w3_ref[2],
                        preferred_element_type=jnp.float32)          # (HWt, C) f32

    # residual add in f32.
    o_ref[0] = (x_c + acc).astype(o_ref.dtype)


def _pick_rows_per_tile(H, W, rows_per_tile):
    """Largest divisor of H with at most ~8K pixels per tile (or user override)."""
    if rows_per_tile is None:
        target = max(1, 8192 // max(W, 1))
    else:
        target = max(1, int(rows_per_tile))
    target = min(target, H)
    R = 1
    for d in range(1, H + 1):
        if H % d == 0 and d <= target:
            R = d
    return R


def wdsr_block_forward(x, params, rows_per_tile=None):
    """x: (N, H, W, C) float32, params: dict of weights. Returns (N, H, W, C)."""
    N, H, W, C = x.shape
    assert W % 8 == 0, "row-tiled kernel assumes W is a multiple of 8 (sublane tiling)"
    w1, b1 = params["w1"], params["b1"]      # (C, C1), (1, C1)
    w2, b2 = params["w2"], params["b2"]      # (C1, Cm), (1, Cm)
    w3, b3 = params["w3"], params["b3"]      # (3, 3, Cm, C), (1, C)
    C1 = w1.shape[1]
    Cm = w2.shape[1]

    # Pad the odd intermediate channel count (Cm=25 -> 32): padded channels
    # carry zero weights, so the forward pass is unchanged.
    Cm_p = ((Cm + 31) // 32) * 32
    pad = Cm_p - Cm
    w2_p = jnp.pad(w2, ((0, 0), (0, pad)))
    b2_p = jnp.pad(b2, ((0, 0), (0, pad)))
    w3_p = jnp.pad(w3, ((0, 0), (0, 0), (0, pad), (0, 0)))
    w3_rows = w3_p.reshape(3, 3 * Cm_p, C)   # per kernel-row, (kx, ci)-major

    # Cast MXU operands to bf16 once in the wrapper; biases stay f32.
    w1_b = w1.astype(jnp.bfloat16)
    w2_b = w2_p.astype(jnp.bfloat16)
    w3_b = w3_rows.astype(jnp.bfloat16)

    x_flat = x.reshape(N, H * W, C)

    R = _pick_rows_per_tile(H, W, rows_per_tile)
    n_row_tiles = H // R
    HWt = R * W
    HWe = (R + 2) * W

    # Rough per-step VMEM: double-buffered x/out blocks + halo rows + live
    # intermediates + weights.  Generous 2x headroom, clamped for v7x's 64 MiB.
    est = (2 * HWt * C * 4 + 2 * 2 * W * C * 4 + 2 * HWt * C * 4
           + HWe * C * 4 + HWe * C1 * (4 + 2) + 3 * HWe * Cm_p * 4
           + HWe * 3 * Cm_p * 2 + HWt * C * 4
           + 2 * (C * C1 * 2 + C1 * Cm_p * 2 + 9 * Cm_p * C * 2
                  + (C1 + Cm_p + C) * 4))
    vmem_limit = int(min(48 * 2 ** 20, max(32 * 2 ** 20, 2 * est)))

    kernel = functools.partial(_wdsr_kernel, R=R, W=W)

    def x_main_map(n, r):
        return (n, r, 0)

    def x_prev_map(n, r):
        return (n, jnp.maximum(r * R - 1, 0), 0)       # clamped; zeroed in-kernel

    def x_next_map(n, r):
        return (n, jnp.minimum(r * R + R, H - 1), 0)   # clamped; zeroed in-kernel

    out_flat = pl.pallas_call(
        kernel,
        out_shape=jax.ShapeDtypeStruct((N, H * W, C), x.dtype),
        grid_spec=pltpu.PrefetchScalarGridSpec(
            num_scalar_prefetch=0,
            grid=(N, n_row_tiles),
            in_specs=[
                pl.BlockSpec((1, W, C), x_prev_map),               # x halo row above
                pl.BlockSpec((1, HWt, C), x_main_map),             # x tile rows
                pl.BlockSpec((1, W, C), x_next_map),               # x halo row below
                pl.BlockSpec((C, C1), lambda n, r: (0, 0)),        # w1 (bf16)
                pl.BlockSpec((1, C1), lambda n, r: (0, 0)),        # b1
                pl.BlockSpec((C1, Cm_p), lambda n, r: (0, 0)),     # w2 (bf16)
                pl.BlockSpec((1, Cm_p), lambda n, r: (0, 0)),      # b2
                pl.BlockSpec((3, 3 * Cm_p, C), lambda n, r: (0, 0, 0)),  # w3 (bf16)
                pl.BlockSpec((1, C), lambda n, r: (0, 0)),         # b3
            ],
            out_specs=pl.BlockSpec((1, HWt, C), x_main_map),
        ),
        compiler_params=pltpu.CompilerParams(
            dimension_semantics=("parallel", "parallel"),
            vmem_limit_bytes=vmem_limit),
    )(x_flat, x_flat, x_flat, w1_b, b1, w2_b, b2_p, w3_b, b3)

    return out_flat.reshape(N, H, W, C)


def init_params(key, nf=32, exp=6, lrr=0.8):
    C, C1, Cm = nf, nf * exp, int(nf * lrr)
    k = jax.random.split(key, 6)
    scale = 0.05
    return {
        "w1": scale * jax.random.normal(k[0], (C, C1), jnp.float32),
        "b1": scale * jax.random.normal(k[1], (1, C1), jnp.float32),
        "w2": scale * jax.random.normal(k[2], (C1, Cm), jnp.float32),
        "b2": scale * jax.random.normal(k[3], (1, Cm), jnp.float32),
        "w3": scale * jax.random.normal(k[4], (3, 3, Cm, C), jnp.float32),
        "b3": scale * jax.random.normal(k[5], (1, C), jnp.float32),
    }


def reference_forward(x, params):
    """Pure-JAX f32 reference (NHWC convs) for correctness checking."""
    dn = ("NHWC", "HWIO", "NHWC")
    C = x.shape[-1]
    C1 = params["w1"].shape[1]
    Cm = params["w2"].shape[1]
    w1 = params["w1"].reshape(1, 1, C, C1)
    w2 = params["w2"].reshape(1, 1, C1, Cm)
    w3 = params["w3"]  # (3,3,Cm,C) already HWIO
    h = jax.lax.conv_general_dilated(x, w1, (1, 1), "SAME",
                                     dimension_numbers=dn) + params["b1"].reshape(1, 1, 1, C1)
    h = jnp.maximum(h, 0.0)
    h = jax.lax.conv_general_dilated(h, w2, (1, 1), "SAME",
                                     dimension_numbers=dn) + params["b2"].reshape(1, 1, 1, Cm)
    h = jax.lax.conv_general_dilated(h, w3, (1, 1), "SAME",
                                     dimension_numbers=dn) + params["b3"].reshape(1, 1, 1, C)
    return x + h


if __name__ == "__main__":
    key = jax.random.PRNGKey(0)
    kx, kp = jax.random.split(key)

    N, H, W, nf = 2, 16, 16, 32          # nf matches module default
    x = jax.random.normal(kx, (N, H, W, nf), jnp.float32)
    params = init_params(kp, nf=nf, exp=6, lrr=0.8)

    ref = reference_forward(x, params)

    # Exercise both the multi-tile halo path (4 rows/tile -> grid (2, 4)) and
    # the auto tile-size path (whole image fits one tile at this toy size).
    for rpt in (4, None):
        out = jax.block_until_ready(wdsr_block_forward(x, params, rows_per_tile=rpt))
        assert out.shape == ref.shape
        # bf16 MXU operands (f32 accumulation) -> relaxed tolerance vs f32 reference.
        assert jnp.allclose(out, ref, atol=2e-2, rtol=2e-2), \
            f"rows_per_tile={rpt}: max abs err = {jnp.max(jnp.abs(out - ref))}"

    print("KERNEL_OK")
</pallas_src>

<mosaic_0001>
module attributes {stable_mosaic.version = 11 : i64} {
  func.func @_wdsr_kernel(%arg0: i32, %arg1: i32, %arg2: memref<1x16x32xf32, #tpu.memory_space<vmem>>, %arg3: memref<1x64x32xf32, #tpu.memory_space<vmem>>, %arg4: memref<1x16x32xf32, #tpu.memory_space<vmem>>, %arg5: memref<32x192xbf16, #tpu.memory_space<vmem>>, %arg6: memref<1x192xf32, #tpu.memory_space<vmem>>, %arg7: memref<192x32xbf16, #tpu.memory_space<vmem>>, %arg8: memref<1x32xf32, #tpu.memory_space<vmem>>, %arg9: memref<3x96x32xbf16, #tpu.memory_space<vmem>>, %arg10: memref<1x32xf32, #tpu.memory_space<vmem>>, %arg11: memref<1x64x32xf32, #tpu.memory_space<vmem>>) attributes {dimension_semantics = [#tpu.dimension_semantics<parallel>, #tpu.dimension_semantics<parallel>], iteration_bounds = array<i64: 2, 4>, scalar_prefetch = 0 : i64, scratch_operands = 0 : i64, tpu.core_type = #tpu.core_type<tc>, window_params = [{transform_indices = @transform_0, window_bounds = array<i64: 1, 16, 32>}, {transform_indices = @transform_1, window_bounds = array<i64: 1, 64, 32>}, {transform_indices = @transform_2, window_bounds = array<i64: 1, 16, 32>}, {pipeline_mode = #tpu.pipeline_mode<synchronous>, transform_indices = @transform_3, window_bounds = array<i64: 32, 192>}, {pipeline_mode = #tpu.pipeline_mode<synchronous>, transform_indices = @transform_4, window_bounds = array<i64: 1, 192>}, {pipeline_mode = #tpu.pipeline_mode<synchronous>, transform_indices = @transform_5, window_bounds = array<i64: 192, 32>}, {pipeline_mode = #tpu.pipeline_mode<synchronous>, transform_indices = @transform_6, window_bounds = array<i64: 1, 32>}, {pipeline_mode = #tpu.pipeline_mode<synchronous>, transform_indices = @transform_7, window_bounds = array<i64: 3, 96, 32>}, {pipeline_mode = #tpu.pipeline_mode<synchronous>, transform_indices = @transform_8, window_bounds = array<i64: 1, 32>}, {transform_indices = @transform_9, window_bounds = array<i64: 1, 64, 32>}]} {
    %c0 = arith.constant 0 : index
    %c0_0 = arith.constant 0 : index
    %c0_1 = arith.constant 0 : index
    %0 = vector.load %arg3[%c0, %c0_0, %c0_1] : memref<1x64x32xf32, #tpu.memory_space<vmem>>, vector<1x64x32xf32>
    %1 = vector.shape_cast %0 : vector<1x64x32xf32> to vector<64x32xf32>
    %c0_2 = arith.constant 0 : index
    %c0_3 = arith.constant 0 : index
    %c0_4 = arith.constant 0 : index
    %2 = vector.load %arg2[%c0_2, %c0_3, %c0_4] : memref<1x16x32xf32, #tpu.memory_space<vmem>>, vector<1x16x32xf32>
    %3 = vector.shape_cast %2 : vector<1x16x32xf32> to vector<16x32xf32>
    %c0_5 = arith.constant 0 : index
    %c0_6 = arith.constant 0 : index
    %c0_7 = arith.constant 0 : index
    %4 = vector.load %arg4[%c0_5, %c0_6, %c0_7] : memref<1x16x32xf32, #tpu.memory_space<vmem>>, vector<1x16x32xf32>
    %5 = vector.shape_cast %4 : vector<1x16x32xf32> to vector<16x32xf32>
    %6 = tpu.concatenate %3, %1, %5 in 0 : vector<16x32xf32>, vector<64x32xf32>, vector<16x32xf32> -> vector<96x32xf32>
    %7 = arith.truncf %6 : vector<96x32xf32> to vector<96x32xbf16>
    %c0_8 = arith.constant 0 : index
    %c0_9 = arith.constant 0 : index
    %8 = vector.load %arg5[%c0_8, %c0_9] : memref<32x192xbf16, #tpu.memory_space<vmem>>, vector<32x192xbf16>
    %cst = arith.constant dense<0.000000e+00> : vector<96x192xf32>
    %9 = tpu.matmul %7, %8, %cst {dimension_numbers = #tpu.dot_dimension_numbers<[1], [0], [0], [1], [0, 0, 1, 1], [], []>} : vector<96x32xbf16>, vector<32x192xbf16>, vector<96x192xf32> -> vector<96x192xf32>
    %c0_10 = arith.constant 0 : index
    %c0_11 = arith.constant 0 : index
    %10 = vector.load %arg6[%c0_10, %c0_11] : memref<1x192xf32, #tpu.memory_space<vmem>>, vector<1x192xf32>
    %11 = vector.broadcast %10 : vector<1x192xf32> to vector<96x192xf32>
    %12 = arith.addf %9, %11 : vector<96x192xf32>
    %cst_12 = arith.constant 0.000000e+00 : f32
    %13 = vector.broadcast %cst_12 : f32 to vector<96x192xf32>
    %14 = arith.maximumf %12, %13 : vector<96x192xf32>
    %15 = arith.truncf %14 : vector<96x192xf32> to vector<96x192xbf16>
    %c0_13 = arith.constant 0 : index
    %c0_14 = arith.constant 0 : index
    %16 = vector.load %arg7[%c0_13, %c0_14] : memref<192x32xbf16, #tpu.memory_space<vmem>>, vector<192x32xbf16>
    %cst_15 = arith.constant dense<0.000000e+00> : vector<96x32xf32>
    %17 = tpu.matmul %15, %16, %cst_15 {dimension_numbers = #tpu.dot_dimension_numbers<[1], [0], [0], [1], [0, 0, 1, 1], [], []>} : vector<96x192xbf16>, vector<192x32xbf16>, vector<96x32xf32> -> vector<96x32xf32>
    %c0_16 = arith.constant 0 : index
    %c0_17 = arith.constant 0 : index
    %18 = vector.load %arg8[%c0_16, %c0_17] : memref<1x32xf32, #tpu.memory_space<vmem>>, vector<1x32xf32>
    %19 = vector.broadcast %18 : vector<1x32xf32> to vector<96x32xf32>
    %20 = arith.addf %17, %19 : vector<96x32xf32>
    %21 = tpu.iota {dimensions = array<i32: 0>} : vector<96x1xi32>
    %c0_i32 = arith.constant 0 : i32
    %22 = arith.cmpi sgt, %arg1, %c0_i32 : i32
    %c16_i32 = arith.constant 16 : i32
    %23 = vector.broadcast %c16_i32 : i32 to vector<96x1xi32>
    %24 = arith.cmpi sge, %21, %23 : vector<96x1xi32>
    %25 = vector.broadcast %22 : i1 to vector<96x1xi1>
    %26 = arith.ori %25, %24 : vector<96x1xi1>
    %c3_i32 = arith.constant 3 : i32
    %27 = arith.cmpi slt, %arg1, %c3_i32 : i32
    %c80_i32 = arith.constant 80 : i32
    %28 = vector.broadcast %c80_i32 : i32 to vector<96x1xi32>
    %29 = arith.cmpi slt, %21, %28 : vector<96x1xi32>
    %30 = vector.broadcast %27 : i1 to vector<96x1xi1>
    %31 = arith.ori %30, %29 : vector<96x1xi1>
    %32 = arith.andi %26, %31 : vector<96x1xi1>
    %cst_18 = arith.constant 0.000000e+00 : f32
    %33 = vector.shape_cast %32 : vector<96x1xi1> to vector<96x1xi1>
    %34 = vector.broadcast %33 : vector<96x1xi1> to vector<96x32xi1>
    %35 = vector.broadcast %cst_18 : f32 to vector<96x32xf32>
    %36 = arith.select %34, %20, %35 : vector<96x32xi1>, vector<96x32xf32>
    %c16_i32_19 = arith.constant 16 : i32
    %c0_i32_20 = arith.constant 0 : i32
    %37 = arith.cmpi eq, %c16_i32_19, %c0_i32_20 : i32
    %c1_i32 = arith.constant 1 : i32
    %38 = arith.select %37, %c1_i32, %c16_i32_19 : i32
    %39 = vector.broadcast %38 : i32 to vector<96x1xi32>
    %40 = arith.remsi %21, %39 : vector<96x1xi32>
    %c0_i32_21 = arith.constant 0 : i32
    %41 = vector.broadcast %c0_i32_21 : i32 to vector<96x1xi32>
    %42 = arith.cmpi ne, %40, %41 : vector<96x1xi32>
    %c0_i32_22 = arith.constant 0 : i32
    %43 = vector.broadcast %c0_i32_22 : i32 to vector<96x1xi32>
    %44 = arith.cmpi slt, %40, %43 : vector<96x1xi32>
    %c0_i32_23 = arith.constant 0 : i32
    %45 = arith.cmpi slt, %38, %c0_i32_23 : i32
    %46 = vector.broadcast %45 : i1 to vector<96x1xi1>
    %47 = vector.broadcast %46 : vector<96x1xi1> to vector<96x1xi1>
    %48 = arith.xori %44, %47 : vector<96x1xi1>
    %49 = arith.andi %48, %42 : vector<96x1xi1>
    %50 = vector.broadcast %38 : i32 to vector<96x1xi32>
    %51 = arith.addi %40, %50 : vector<96x1xi32>
    %52 = arith.select %49, %51, %40 : vector<96x1xi1>, vector<96x1xi32>
    %c1_i32_24 = arith.constant 1 : i32
    %53 = vector.broadcast %c1_i32_24 : i32 to vector<96x1xi32>
    %54 = arith.cmpi sge, %52, %53 : vector<96x1xi32>
    %c1_i32_25 = arith.constant 1 : i32
    %55 = tpu.dynamic_rotate %36 by %c1_i32_25 dim 0 : vector<96x32xf32>, i32 -> vector<96x32xf32>
    %cst_26 = arith.constant 0.000000e+00 : f32
    %56 = vector.shape_cast %54 : vector<96x1xi1> to vector<96x1xi1>
    %57 = vector.broadcast %56 : vector<96x1xi1> to vector<96x32xi1>
    %58 = vector.broadcast %cst_26 : f32 to vector<96x32xf32>
    %59 = arith.select %57, %55, %58 : vector<96x32xi1>, vector<96x32xf32>
    %c14_i32 = arith.constant 14 : i32
    %60 = vector.broadcast %c14_i32 : i32 to vector<96x1xi32>
    %61 = arith.cmpi sle, %52, %60 : vector<96x1xi32>
    %c95_i32 = arith.constant 95 : i32
    %62 = tpu.dynamic_rotate %36 by %c95_i32 dim 0 : vector<96x32xf32>, i32 -> vector<96x32xf32>
    %cst_27 = arith.constant 0.000000e+00 : f32
    %63 = vector.shape_cast %61 : vector<96x1xi1> to vector<96x1xi1>
    %64 = vector.broadcast %63 : vector<96x1xi1> to vector<96x32xi1>
    %65 = vector.broadcast %cst_27 : f32 to vector<96x32xf32>
    %66 = arith.select %64, %62, %65 : vector<96x32xi1>, vector<96x32xf32>
    %67 = arith.truncf %59 : vector<96x32xf32> to vector<96x32xbf16>
    %68 = arith.truncf %36 : vector<96x32xf32> to vector<96x32xbf16>
    %69 = arith.truncf %66 : vector<96x32xf32> to vector<96x32xbf16>
    %70 = tpu.concatenate %67, %68, %69 in 1 : vector<96x32xbf16>, vector<96x32xbf16>, vector<96x32xbf16> -> vector<96x96xbf16>
    %c0_28 = arith.constant 0 : index
    %c0_29 = arith.constant 0 : index
    %71 = vector.load %arg10[%c0_28, %c0_29] : memref<1x32xf32, #tpu.memory_space<vmem>>, vector<1x32xf32>
    %72 = vector.extract_strided_slice %70 {offsets = [0, 0], sizes = [64, 96], strides = [1, 1]} : vector<96x96xbf16> to vector<64x96xbf16>
    %c0_30 = arith.constant 0 : index
    %c0_31 = arith.constant 0 : index
    %c0_32 = arith.constant 0 : index
    %73 = vector.load %arg9[%c0_30, %c0_31, %c0_32] : memref<3x96x32xbf16, #tpu.memory_space<vmem>>, vector<1x96x32xbf16>
    %74 = vector.shape_cast %73 : vector<1x96x32xbf16> to vector<96x32xbf16>
    %cst_33 = arith.constant dense<0.000000e+00> : vector<64x32xf32>
    %75 = tpu.matmul %72, %74, %cst_33 {dimension_numbers = #tpu.dot_dimension_numbers<[1], [0], [0], [1], [0, 0, 1, 1], [], []>} : vector<64x96xbf16>, vector<96x32xbf16>, vector<64x32xf32> -> vector<64x32xf32>
    %76 = vector.broadcast %71 : vector<1x32xf32> to vector<64x32xf32>
    %77 = arith.addf %76, %75 : vector<64x32xf32>
    %78 = vector.extract_strided_slice %70 {offsets = [16, 0], sizes = [64, 96], strides = [1, 1]} : vector<96x96xbf16> to vector<64x96xbf16>
    %c1 = arith.constant 1 : index
    %c0_34 = arith.constant 0 : index
    %c0_35 = arith.constant 0 : index
    %79 = vector.load %arg9[%c1, %c0_34, %c0_35] : memref<3x96x32xbf16, #tpu.memory_space<vmem>>, vector<1x96x32xbf16>
    %80 = vector.shape_cast %79 : vector<1x96x32xbf16> to vector<96x32xbf16>
    %cst_36 = arith.constant dense<0.000000e+00> : vector<64x32xf32>
    %81 = tpu.matmul %78, %80, %cst_36 {dimension_numbers = #tpu.dot_dimension_numbers<[1], [0], [0], [1], [0, 0, 1, 1], [], []>} : vector<64x96xbf16>, vector<96x32xbf16>, vector<64x32xf32> -> vector<64x32xf32>
    %82 = arith.addf %77, %81 : vector<64x32xf32>
    %83 = vector.extract_strided_slice %70 {offsets = [32, 0], sizes = [64, 96], strides = [1, 1]} : vector<96x96xbf16> to vector<64x96xbf16>
    %c2 = arith.constant 2 : index
    %c0_37 = arith.constant 0 : index
    %c0_38 = arith.constant 0 : index
    %84 = vector.load %arg9[%c2, %c0_37, %c0_38] : memref<3x96x32xbf16, #tpu.memory_space<vmem>>, vector<1x96x32xbf16>
    %85 = vector.shape_cast %84 : vector<1x96x32xbf16> to vector<96x32xbf16>
    %cst_39 = arith.constant dense<0.000000e+00> : vector<64x32xf32>
    %86 = tpu.matmul %83, %85, %cst_39 {dimension_numbers = #tpu.dot_dimension_numbers<[1], [0], [0], [1], [0, 0, 1, 1], [], []>} : vector<64x96xbf16>, vector<96x32xbf16>, vector<64x32xf32> -> vector<64x32xf32>
    %87 = arith.addf %82, %86 : vector<64x32xf32>
    %88 = arith.addf %1, %87 : vector<64x32xf32>
    %c0_40 = arith.constant 0 : index
    %c0_41 = arith.constant 0 : index
    %c0_42 = arith.constant 0 : index
    %89 = vector.load %arg11[%c0_40, %c0_41, %c0_42] : memref<1x64x32xf32, #tpu.memory_space<vmem>>, vector<1x64x32xf32>
    %90 = vector.shape_cast %89 : vector<1x64x32xf32> to vector<64x32xf32>
    %91 = vector.shape_cast %88 : vector<64x32xf32> to vector<1x64x32xf32>
    tpu.vector_store %arg11[%c0_40, %c0_41, %c0_42], %91 {strides = array<i32>} : memref<1x64x32xf32, #tpu.memory_space<vmem>>, vector<1x64x32xf32>,
    return
  }
  func.func @transform_0(%arg0: i32, %arg1: i32) -> (i32, i32, i32) {
    %c4_i32 = arith.constant 4 : i32
    %0 = arith.muli %arg1, %c4_i32 : i32
    %c1_i32 = arith.constant 1 : i32
    %1 = arith.subi %0, %c1_i32 : i32
    %c0_i32 = arith.constant 0 : i32
    %2 = arith.maxsi %1, %c0_i32 : i32
    %c0_i32_0 = arith.constant 0 : i32
    %c0_i32_1 = arith.constant 0 : i32
    return %arg0, %2, %c0_i32_0 : i32, i32, i32
  }
  func.func @transform_1(%arg0: i32, %arg1: i32) -> (i32, i32, i32) {
    %c0_i32 = arith.constant 0 : i32
    %c0_i32_0 = arith.constant 0 : i32
    return %arg0, %arg1, %c0_i32 : i32, i32, i32
  }
  func.func @transform_2(%arg0: i32, %arg1: i32) -> (i32, i32, i32) {
    %c4_i32 = arith.constant 4 : i32
    %0 = arith.muli %arg1, %c4_i32 : i32
    %c4_i32_0 = arith.constant 4 : i32
    %1 = arith.addi %0, %c4_i32_0 : i32
    %c15_i32 = arith.constant 15 : i32
    %2 = arith.minsi %1, %c15_i32 : i32
    %c0_i32 = arith.constant 0 : i32
    %c0_i32_1 = arith.constant 0 : i32
    return %arg0, %2, %c0_i32 : i32, i32, i32
  }
  func.func @transform_3(%arg0: i32, %arg1: i32) -> (i32, i32) {
    %c0_i32 = arith.constant 0 : i32
    %c0_i32_0 = arith.constant 0 : i32
    %c0_i32_1 = arith.constant 0 : i32
    return %c0_i32, %c0_i32_0 : i32, i32
  }
  func.func @transform_4(%arg0: i32, %arg1: i32) -> (i32, i32) {
    %c0_i32 = arith.constant 0 : i32
    %c0_i32_0 = arith.constant 0 : i32
    %c0_i32_1 = arith.constant 0 : i32
    return %c0_i32, %c0_i32_0 : i32, i32
  }
  func.func @transform_5(%arg0: i32, %arg1: i32) -> (i32, i32) {
    %c0_i32 = arith.constant 0 : i32
    %c0_i32_0 = arith.constant 0 : i32
    %c0_i32_1 = arith.constant 0 : i32
    return %c0_i32, %c0_i32_0 : i32, i32
  }
  func.func @transform_6(%arg0: i32, %arg1: i32) -> (i32, i32) {
    %c0_i32 = arith.constant 0 : i32
    %c0_i32_0 = arith.constant 0 : i32
    %c0_i32_1 = arith.constant 0 : i32
    return %c0_i32, %c0_i32_0 : i32, i32
  }
  func.func @transform_7(%arg0: i32, %arg1: i32) -> (i32, i32, i32) {
    %c0_i32 = arith.constant 0 : i32
    %c0_i32_0 = arith.constant 0 : i32
    %c0_i32_1 = arith.constant 0 : i32
    %c0_i32_2 = arith.constant 0 : i32
    return %c0_i32, %c0_i32_0, %c0_i32_1 : i32, i32, i32
  }
  func.func @transform_8(%arg0: i32, %arg1: i32) -> (i32, i32) {
    %c0_i32 = arith.constant 0 : i32
    %c0_i32_0 = arith.constant 0 : i32
    %c0_i32_1 = arith.constant 0 : i32
    return %c0_i32, %c0_i32_0 : i32, i32
  }
  func.func @transform_9(%arg0: i32, %arg1: i32) -> (i32, i32, i32) {
    %c0_i32 = arith.constant 0 : i32
    %c0_i32_0 = arith.constant 0 : i32
    return %arg0, %arg1, %c0_i32 : i32, i32, i32
  }
}

</mosaic_0001>

<llo_original>
// kernel: tpu_custom_call.1
$region0: #{tpu_custom_call.1}
  #allocation0 [shape = 'u32[]', space=smem, size = 0x4, offset = 0x4, fixed_abs, tag = 'smem constant byte address 0x4 - core index']
  #allocation1 [shape = 'u32[144,128]{1,0:T(1,128)}', space=vmem, size = 0x12000, scoped, tag = 'internal scratch']
  %s0 = inlined_call_operand.vmem [shape: f32[2,256,32], index: 0, kind: input, shape index: {}]
  %s1 = inlined_call_operand.vmem [shape: f32[2,256,32], index: 1, kind: input, shape index: {}]
  %s2 = inlined_call_operand.vmem [shape: f32[2,256,32], index: 2, kind: input, shape index: {}]
  %s3 = inlined_call_operand.vmem [shape: bf16[32,192], index: 3, kind: input, shape index: {}]
  %s4 = inlined_call_operand.vmem [shape: f32[1,192], index: 4, kind: input, shape index: {}]
  %s5 = inlined_call_operand.vmem [shape: bf16[192,32], index: 5, kind: input, shape index: {}]
  %s6 = inlined_call_operand.vmem [shape: f32[1,32], index: 6, kind: input, shape index: {}]
  %s7 = inlined_call_operand.vmem [shape: bf16[3,96,32], index: 7, kind: input, shape index: {}]
  %s8 = inlined_call_operand.vmem [shape: f32[1,32], index: 8, kind: input, shape index: {}]
  %s9 = inlined_call_operand.vmem [shape: f32[2,256,32], index: 9, kind: output, shape index: {}]
  %s10 = sld [smem:[#allocation0]]
  $region69: #{tpu_custom_call.1} parent=0
    _
  %s12 = ssub.s32 1, %s10
  %s13 = scalar_select 0, %s12, %s10
  loop: start=0, step=1, limit=10
  $region2: #{tpu_custom_call.1} parent=0 // loop_pre_header
    _
  $region3: #{tpu_custom_call.1} parent=0 // loop_header
    %s15 = sphi 0, %s19
    %p16 = scmp.ge.s32.totalorder %s15, 10
    %s22 = sphi 0, %s34
    %s23 = sphi 0, %s30
    %s24 = sphi 0, %s22
    %s25 = sphi 0, %s23
    %s26 = sphi 0, %s24
    %s27 = sphi 0, %s25
    %s47 = sphi 0, %s49
    %s50 = sphi 0, %s47
    %s51 = sphi 0, %s50
    %s67 = sphi 0, %s51
    %s75 = sphi 0, %s77
    %s78 = sphi 0, %s75
    %s79 = sphi 0, %s78
    %s95 = sphi 0, %s79
    %s111 = sphi 0, %s113
    %s114 = sphi 0, %s111
    %s115 = sphi 0, %s114
    %s131 = sphi 0, %s115
    %s135 = sphi 0, %s135
    %s137 = sphi 0, %s135
    %s138 = sphi 0, %s137
    %s152 = sphi 0, %s138
    %s156 = sphi 0, %s156
    %s158 = sphi 0, %s156
    %s159 = sphi 0, %s158
    %s173 = sphi 0, %s159
    %s177 = sphi 0, %s177
    %s179 = sphi 0, %s177
    %s180 = sphi 0, %s179
    %s194 = sphi 0, %s180
    %s198 = sphi 0, %s198
    %s200 = sphi 0, %s198
    %s201 = sphi 0, %s200
    %s215 = sphi 0, %s201
    %s219 = sphi 0, %s219
    %s221 = sphi 0, %s219
    %s222 = sphi 0, %s221
    %s236 = sphi 0, %s222
    %s240 = sphi 0, %s240
    %s242 = sphi 0, %s240
    %s243 = sphi 0, %s242
    %s257 = sphi 0, %s243
    %s265 = sphi 0, %s267
    %s268 = sphi 0, %s265
    %s269 = sphi 0, %s268
    %s285 = sphi 0, %s269
  $region4: #{tpu_custom_call.1} parent=0 // loop_header_branch
    %18 = sbr.rel (%p16) target = $region8
  $region5: #{tpu_custom_call.1} parent=0 // loop_body
    %s20 = ssub.s32 %s15, 1
    %s21 = ssub.s32 %s15, 2
    %s28 = sadd.s32 1, %s23
    %p29 = scmp.ge.s32.totalorder %s28, 4
    %s30 = scalar_select %p29, 0, %s28
    %s31 = sadd.s32 1, %s22
    %s32 = scalar_select %p29, %s31, %s22
    %p33 = scmp.ge.s32.totalorder %s32, 2
    %s34 = scalar_select %p33, 0, %s32
    %s35 = smul.u32 %s23, 4
    %s36 = ssub.s32 %s35, 1
    %p37 = scmp.gt.s32.totalorder %s36, 0
    %s38 = scalar_select %p37, %s36, 0
    %s39 = smul.u32 %s30, 4
    %s40 = ssub.s32 %s39, 1
    %p41 = scmp.gt.s32.totalorder %s40, 0
    %s42 = scalar_select %p41, %s40, 0
    %s43 = ssub.s32 %s22, %s34
    %s44 = ssub.s32 %s38, %s42
    %s45 = sor.u32 %s43, %s44
    %p46 = scmp.eq.s32.totalorder %s45, 0
    %s48 = sadd.s32 %s47, 1
    %s49 = scalar_select %p46, %s47, %s48
    %p52 = pneg %p46
    %p53 = scmp.eq.s32.totalorder %s15, 7
    %p54 = por %p52, %p53
    %p55 = scmp.ne.s32.totalorder %s47, %s50
    %p56 = scmp.eq.s32.totalorder %s15, 0
    %p57 = por %p55, %p56
    %p58 = scmp.ne.s32.totalorder %s47, %s50
    %p59 = scmp.eq.s32.totalorder %s20, 7
    %p60 = por %p58, %p59
    %p61 = scmp.ne.s32.totalorder %s50, %s51
    %p62 = scmp.eq.s32.totalorder %s20, 0
    %p63 = por %p61, %p62
    %p64 = scmp.ne.s32.totalorder %s50, %s51
    %p65 = scmp.eq.s32.totalorder %s21, 7
    %p66 = por %p64, %p65
    %p68 = scmp.ne.s32.totalorder %s51, %s67
    %p69 = scmp.eq.s32.totalorder %s21, 0
    %p70 = por %p68, %p69
    %s71 = ssub.s32 %s22, %s34
    %s72 = ssub.s32 %s23, %s30
    %s73 = sor.u32 %s71, %s72
    %p74 = scmp.eq.s32.totalorder %s73, 0
    %s76 = sadd.s32 %s75, 1
    %s77 = scalar_select %p74, %s75, %s76
    %p80 = pneg %p74
    %p81 = scmp.eq.s32.totalorder %s15, 7
    %p82 = por %p80, %p81
    %p83 = scmp.ne.s32.totalorder %s75, %s78
    %p84 = scmp.eq.s32.totalorder %s15, 0
    %p85 = por %p83, %p84
    %p86 = scmp.ne.s32.totalorder %s75, %s78
    %p87 = scmp.eq.s32.totalorder %s20, 7
    %p88 = por %p86, %p87
    %p89 = scmp.ne.s32.totalorder %s78, %s79
    %p90 = scmp.eq.s32.totalorder %s20, 0
    %p91 = por %p89, %p90
    %p92 = scmp.ne.s32.totalorder %s78, %s79
    %p93 = scmp.eq.s32.totalorder %s21, 7
    %p94 = por %p92, %p93
    %p96 = scmp.ne.s32.totalorder %s79, %s95
    %p97 = scmp.eq.s32.totalorder %s21, 0
    %p98 = por %p96, %p97
    %s99 = smul.u32 %s23, 4
    %s100 = sadd.s32 %s99, 4
    %p101 = scmp.lt.s32.totalorder %s100, 15
    %s102 = scalar_select %p101, %s100, 15
    %s103 = smul.u32 %s30, 4
    %s104 = sadd.s32 %s103, 4
    %p105 = scmp.lt.s32.totalorder %s104, 15
    %s106 = scalar_select %p105, %s104, 15
    %s107 = ssub.s32 %s22, %s34
    %s108 = ssub.s32 %s102, %s106
    %s109 = sor.u32 %s107, %s108
    %p110 = scmp.eq.s32.totalorder %s109, 0
    %s112 = sadd.s32 %s111, 1
    %s113 = scalar_select %p110, %s111, %s112
    %p116 = pneg %p110
    %p117 = scmp.eq.s32.totalorder %s15, 7
    %p118 = por %p116, %p117
    %p119 = scmp.ne.s32.totalorder %s111, %s114
    %p120 = scmp.eq.s32.totalorder %s15, 0
    %p121 = por %p119, %p120
    %p122 = scmp.ne.s32.totalorder %s111, %s114
    %p123 = scmp.eq.s32.totalorder %s20, 7
    %p124 = por %p122, %p123
    %p125 = scmp.ne.s32.totalorder %s114, %s115
    %p126 = scmp.eq.s32.totalorder %s20, 0
    %p127 = por %p125, %p126
    %p128 = scmp.ne.s32.totalorder %s114, %s115
    %p129 = scmp.eq.s32.totalorder %s21, 7
    %p130 = por %p128, %p129
    %p132 = scmp.ne.s32.totalorder %s115, %s131
    %p133 = scmp.eq.s32.totalorder %s21, 0
    %p134 = por %p132, %p133
    %s136 = sadd.s32 %s135, 1
    %p139 = scmp.eq.s32.totalorder %s15, 7
    %p140 = scmp.ne.s32.totalorder %s135, %s137
    %p141 = scmp.eq.s32.totalorder %s15, 0
    %p142 = por %p140, %p141
    %p143 = scmp.ne.s32.totalorder %s135, %s137
    %p144 = scmp.eq.s32.totalorder %s20, 7
    %p145 = por %p143, %p144
    %p146 = scmp.ne.s32.totalorder %s137, %s138
    %p147 = scmp.eq.s32.totalorder %s20, 0
    %p148 = por %p146, %p147
    %p149 = scmp.ne.s32.totalorder %s137, %s138
    %p150 = scmp.eq.s32.totalorder %s21, 7
    %p151 = por %p149, %p150
    %p153 = scmp.ne.s32.totalorder %s138, %s152
    %p154 = scmp.eq.s32.totalorder %s21, 0
    %p155 = por %p153, %p154
    %s157 = sadd.s32 %s156, 1
    %p160 = scmp.eq.s32.totalorder %s15, 7
    %p161 = scmp.ne.s32.totalorder %s156, %s158
    %p162 = scmp.eq.s32.totalorder %s15, 0
    %p163 = por %p161, %p162
    %p164 = scmp.ne.s32.totalorder %s156, %s158
    %p165 = scmp.eq.s32.totalorder %s20, 7
    %p166 = por %p164, %p165
    %p167 = scmp.ne.s32.totalorder %s158, %s159
    %p168 = scmp.eq.s32.totalorder %s20, 0
    %p169 = por %p167, %p168
    %p170 = scmp.ne.s32.totalorder %s158, %s159
    %p171 = scmp.eq.s32.totalorder %s21, 7
    %p172 = por %p170, %p171
    %p174 = scmp.ne.s32.totalorder %s159, %s173
    %p175 = scmp.eq.s32.totalorder %s21, 0
    %p176 = por %p174, %p175
    %s178 = sadd.s32 %s177, 1
    %p181 = scmp.eq.s32.totalorder %s15, 7
    %p182 = scmp.ne.s32.totalorder %s177, %s179
    %p183 = scmp.eq.s32.totalorder %s15, 0
    %p184 = por %p182, %p183
    %p185 = scmp.ne.s32.totalorder %s177, %s179
    %p186 = scmp.eq.s32.totalorder %s20, 7
    %p187 = por %p185, %p186
    %p188 = scmp.ne.s32.totalorder %s179, %s180
    %p189 = scmp.eq.s32.totalorder %s20, 0
    %p190 = por %p188, %p189
    %p191 = scmp.ne.s32.totalorder %s179, %s180
    %p192 = scmp.eq.s32.totalorder %s21, 7
    %p193 = por %p191, %p192
    %p195 = scmp.ne.s32.totalorder %s180, %s194
    %p196 = scmp.eq.s32.totalorder %s21, 0
    %p197 = por %p195, %p196
    %s199 = sadd.s32 %s198, 1
    %p202 = scmp.eq.s32.totalorder %s15, 7
    %p203 = scmp.ne.s32.totalorder %s198, %s200
    %p204 = scmp.eq.s32.totalorder %s15, 0
    %p205 = por %p203, %p204
    %p206 = scmp.ne.s32.totalorder %s198, %s200
    %p207 = scmp.eq.s32.totalorder %s20, 7
    %p208 = por %p206, %p207
    %p209 = scmp.ne.s32.totalorder %s200, %s201
    %p210 = scmp.eq.s32.totalorder %s20, 0
    %p211 = por %p209, %p210
    %p212 = scmp.ne.s32.totalorder %s200, %s201
    %p213 = scmp.eq.s32.totalorder %s21, 7
    %p214 = por %p212, %p213
    %p216 = scmp.ne.s32.totalorder %s201, %s215
    %p217 = scmp.eq.s32.totalorder %s21, 0
    %p218 = por %p216, %p217
    %s220 = sadd.s32 %s219, 1
    %p223 = scmp.eq.s32.totalorder %s15, 7
    %p224 = scmp.ne.s32.totalorder %s219, %s221
    %p225 = scmp.eq.s32.totalorder %s15, 0
    %p226 = por %p224, %p225
    %p227 = scmp.ne.s32.totalorder %s219, %s221
    %p228 = scmp.eq.s32.totalorder %s20, 7
    %p229 = por %p227, %p228
    %p230 = scmp.ne.s32.totalorder %s221, %s222
    %p231 = scmp.eq.s32.totalorder %s20, 0
    %p232 = por %p230, %p231
    %p233 = scmp.ne.s32.totalorder %s221, %s222
    %p234 = scmp.eq.s32.totalorder %s21, 7
    %p235 = por %p233, %p234
    %p237 = scmp.ne.s32.totalorder %s222, %s236
    %p238 = scmp.eq.s32.totalorder %s21, 0
    %p239 = por %p237, %p238
    %s241 = sadd.s32 %s240, 1
    %p244 = scmp.eq.s32.totalorder %s15, 7
    %p245 = scmp.ne.s32.totalorder %s240, %s242
    %p246 = scmp.eq.s32.totalorder %s15, 0
    %p247 = por %p245, %p246
    %p248 = scmp.ne.s32.totalorder %s240, %s242
    %p249 = scmp.eq.s32.totalorder %s20, 7
    %p250 = por %p248, %p249
    %p251 = scmp.ne.s32.totalorder %s242, %s243
    %p252 = scmp.eq.s32.totalorder %s20, 0
    %p253 = por %p251, %p252
    %p254 = scmp.ne.s32.totalorder %s242, %s243
    %p255 = scmp.eq.s32.totalorder %s21, 7
    %p256 = por %p254, %p255
    %p258 = scmp.ne.s32.totalorder %s243, %s257
    %p259 = scmp.eq.s32.totalorder %s21, 0
    %p260 = por %p258, %p259
    %s261 = ssub.s32 %s22, %s34
    %s262 = ssub.s32 %s23, %s30
    %s263 = sor.u32 %s261, %s262
    %p264 = scmp.eq.s32.totalorder %s263, 0
    %s266 = sadd.s32 %s265, 1
    %s267 = scalar_select %p264, %s265, %s266
    %p270 = pneg %p264
    %p271 = scmp.eq.s32.totalorder %s15, 7
    %p272 = por %p270, %p271
    %p273 = scmp.ne.s32.totalorder %s265, %s268
    %p274 = scmp.eq.s32.totalorder %s15, 0
    %p275 = por %p273, %p274
    %p276 = scmp.ne.s32.totalorder %s265, %s268
    %p277 = scmp.eq.s32.totalorder %s20, 7
    %p278 = por %p276, %p277
    %p279 = scmp.ne.s32.totalorder %s268, %s269
    %p280 = scmp.eq.s32.totalorder %s20, 0
    %p281 = por %p279, %p280
    %p282 = scmp.ne.s32.totalorder %s268, %s269
    %p283 = scmp.eq.s32.totalorder %s21, 7
    %p284 = por %p282, %p283
    %p286 = scmp.ne.s32.totalorder %s269, %s285
    %p287 = scmp.eq.s32.totalorder %s21, 0
    %p288 = por %p286, %p287
    %p289 = scmp.le.s32.totalorder 1, %s15
    %p290 = scmp.lt.s32.totalorder %s15, 9
    %p291 = pnand %p289, %p290
    %p292 = pneg %p291
    // Predicated region
    $region9: #{tpu_custom_call.1} parent=5 // pred_check
      _
    $region10: #{tpu_custom_call.1} parent=5 // pred_check_branch
      %294 = sbr.rel (%p291) target = $region12
    $region11: #{tpu_custom_call.1} parent=5 // pred_region
      %s295 = ssub.s32 %s15, 1
      // Predicated region
      $region13: #{tpu_custom_call.1} parent=11 // pred_check
        %p296 = pneg %p148
      $region14: #{tpu_custom_call.1} parent=11 // pred_check_branch
        %298 = sbr.rel (%p296) target = $region16
      $region15: #{tpu_custom_call.1} parent=11 // pred_region
        _
      $region16: #{tpu_custom_call.1} parent=11 // pred_fallthru
        _
      // Predicated region
      $region17: #{tpu_custom_call.1} parent=11 // pred_check
        %p299 = pneg %p169
      $region18: #{tpu_custom_call.1} parent=11 // pred_check_branch
        %301 = sbr.rel (%p299) target = $region20
      $region19: #{tpu_custom_call.1} parent=11 // pred_region
        _
      $region20: #{tpu_custom_call.1} parent=11 // pred_fallthru
        _
      // Predicated region
      $region21: #{tpu_custom_call.1} parent=11 // pred_check
        %p302 = pneg %p190
      $region22: #{tpu_custom_call.1} parent=11 // pred_check_branch
        %304 = sbr.rel (%p302) target = $region24
      $region23: #{tpu_custom_call.1} parent=11 // pred_region
        _
      $region24: #{tpu_custom_call.1} parent=11 // pred_fallthru
        _
      // Predicated region
      $region25: #{tpu_custom_call.1} parent=11 // pred_check
        %p305 = pneg %p211
      $region26: #{tpu_custom_call.1} parent=11 // pred_check_branch
        %307 = sbr.rel (%p305) target = $region28
      $region27: #{tpu_custom_call.1} parent=11 // pred_region
        _
      $region28: #{tpu_custom_call.1} parent=11 // pred_fallthru
        _
      // Predicated region
      $region29: #{tpu_custom_call.1} parent=11 // pred_check
        %p308 = pneg %p232
      $region30: #{tpu_custom_call.1} parent=11 // pred_check_branch
        %310 = sbr.rel (%p308) target = $region32
      $region31: #{tpu_custom_call.1} parent=11 // pred_region
        _
      $region32: #{tpu_custom_call.1} parent=11 // pred_fallthru
        _
      // Predicated region
      $region33: #{tpu_custom_call.1} parent=11 // pred_check
        %p311 = pneg %p253
      $region34: #{tpu_custom_call.1} parent=11 // pred_check_branch
        %313 = sbr.rel (%p311) target = $region36
      $region35: #{tpu_custom_call.1} parent=11 // pred_region
        _
      $region36: #{tpu_custom_call.1} parent=11 // pred_fallthru
        _
    $region12: #{tpu_custom_call.1} parent=5 // pred_fallthru
      _
    %p314 = scmp.lt.s32.totalorder %s15, 8
    // Predicated region
    $region37: #{tpu_custom_call.1} parent=5 // pred_check
      %p315 = pneg %p314
    $region38: #{tpu_custom_call.1} parent=5 // pred_check_branch
      %317 = sbr.rel (%p315) target = $region40
    $region39: #{tpu_custom_call.1} parent=5 // pred_region
      // Predicated region
      $region41: #{tpu_custom_call.1} parent=39 // pred_check
        %p318 = pneg %p57
      $region42: #{tpu_custom_call.1} parent=39 // pred_check_branch
        %320 = sbr.rel (%p318) target = $region44
      $region43: #{tpu_custom_call.1} parent=39 // pred_region
        %s321 = smul.u32 %s23, 4
        %s322 = ssub.s32 %s321, 1
        %p323 = scmp.gt.s32.totalorder %s322, 0
        %s324 = scalar_select %p323, %s322, 0
        %s325 = smul.u32 2, %s324
        %p326 = scmp.lt.s32.totalorder %s22, 1
        %s327 = scalar_select %p326, %s22, 1
        %p328 = scmp.lt.s32.totalorder %s325, 31
        %s329 = scalar_select %p328, %s325, 31
        %s330 = smul.addr %s327, 32
        %s331 = sadd.s32 %s329, %s330
        %s332 = smul.addr %s331, 8
        %s333 = scalar_lea.vmem %s0, %s332
        %s334 = smul.u32 %s23, 4
        %s335 = ssub.s32 %s334, 1
        %p336 = scmp.gt.s32.totalorder %s335, 0
        %s337 = scalar_select %p336, %s335, 0
        %s338 = smul.u32 2, %s337
      $region44: #{tpu_custom_call.1} parent=39 // pred_fallthru
        _
      // Predicated region
      $region45: #{tpu_custom_call.1} parent=39 // pred_check
        %p339 = pneg %p85
      $region46: #{tpu_custom_call.1} parent=39 // pred_check_branch
        %341 = sbr.rel (%p339) target = $region48
      $region47: #{tpu_custom_call.1} parent=39 // pred_region
        %s342 = smul.u32 8, %s23
        %p343 = scmp.lt.s32.totalorder %s22, 1
        %s344 = scalar_select %p343, %s22, 1
        %p345 = scmp.lt.s32.totalorder %s342, 31
        %s346 = scalar_select %p345, %s342, 31
        %s347 = smul.addr %s344, 32
        %s348 = sadd.s32 %s346, %s347
        %s349 = smul.addr %s348, 8
        %s350 = scalar_lea.vmem %s1, %s349
        %s351 = smul.u32 8, %s23
      $region48: #{tpu_custom_call.1} parent=39 // pred_fallthru
        _
      // Predicated region
      $region49: #{tpu_custom_call.1} parent=39 // pred_check
        %p352 = pneg %p121
      $region50: #{tpu_custom_call.1} parent=39 // pred_check_branch
        %354 = sbr.rel (%p352) target = $region52
      $region51: #{tpu_custom_call.1} parent=39 // pred_region
        %s355 = smul.u32 %s23, 4
        %s356 = sadd.s32 %s355, 4
        %p357 = scmp.lt.s32.totalorder %s356, 15
        %s358 = scalar_select %p357, %s356, 15
        %s359 = smul.u32 2, %s358
        %p360 = scmp.lt.s32.totalorder %s22, 1
        %s361 = scalar_select %p360, %s22, 1
        %p362 = scmp.lt.s32.totalorder %s359, 31
        %s363 = scalar_select %p362, %s359, 31
        %s364 = smul.addr %s361, 32
        %s365 = sadd.s32 %s363, %s364
        %s366 = smul.addr %s365, 8
        %s367 = scalar_lea.vmem %s2, %s366
        %s368 = smul.u32 %s23, 4
        %s369 = sadd.s32 %s368, 4
        %p370 = scmp.lt.s32.totalorder %s369, 15
        %s371 = scalar_select %p370, %s369, 15
        %s372 = smul.u32 2, %s371
      $region52: #{tpu_custom_call.1} parent=39 // pred_fallthru
        _
    $region40: #{tpu_custom_call.1} parent=5 // pred_fallthru
      _
    %p373 = scmp.le.s32.totalorder 1, %s15
    %p374 = scmp.lt.s32.totalorder %s15, 9
    %p375 = pnand %p373, %p374
    %p376 = pneg %p375
    // Predicated region
    $region53: #{tpu_custom_call.1} parent=5 // pred_check
      _
    $region54: #{tpu_custom_call.1} parent=5 // pred_check_branch
      %378 = sbr.rel (%p375) target = $region56
    $region55: #{tpu_custom_call.1} parent=5 // pred_region
      %s379 = ssub.s32 %s15, 1
      %s380 = smul.u32 %s25, 4
      %s381 = ssub.s32 %s380, 1
      %p382 = scmp.gt.s32.totalorder %s381, 0
      %s383 = scalar_select %p382, %s381, 0
      %s384 = smul.u32 2, %s383
      %p385 = scmp.lt.s32.totalorder %s24, 1
      %s386 = scalar_select %p385, %s24, 1
      %p387 = scmp.lt.s32.totalorder %s384, 31
      %s388 = scalar_select %p387, %s384, 31
      %s389 = smul.addr %s386, 32
      %s390 = sadd.s32 %s388, %s389
      %s391 = smul.addr %s390, 8
      %s392 = scalar_lea.vmem %s0, %s391
      %p393 = pneg %p63
      %p394 = pneg %p60
      %s395 = smul.u32 8, %s25
      %p396 = scmp.lt.s32.totalorder %s24, 1
      %s397 = scalar_select %p396, %s24, 1
      %p398 = scmp.lt.s32.totalorder %s395, 31
      %s399 = scalar_select %p398, %s395, 31
      %s400 = smul.addr %s397, 32
      %s401 = sadd.s32 %s399, %s400
      %s402 = smul.addr %s401, 8
      %s403 = scalar_lea.vmem %s1, %s402
      %p404 = pneg %p91
      %p405 = pneg %p88
      %s406 = smul.u32 %s25, 4
      %s407 = sadd.s32 %s406, 4
      %p408 = scmp.lt.s32.totalorder %s407, 15
      %s409 = scalar_select %p408, %s407, 15
      %s410 = smul.u32 2, %s409
      %p411 = scmp.lt.s32.totalorder %s24, 1
      %s412 = scalar_select %p411, %s24, 1
      %p413 = scmp.lt.s32.totalorder %s410, 31
      %s414 = scalar_select %p413, %s410, 31
      %s415 = smul.addr %s412, 32
      %s416 = sadd.s32 %s414, %s415
      %s417 = smul.addr %s416, 8
      %s418 = scalar_lea.vmem %s2, %s417
      %p419 = pneg %p127
      %p420 = pneg %p124
      %p421 = pneg %p148
      %p422 = pneg %p145
      %p423 = pneg %p169
      %p424 = pneg %p166
      %p425 = pneg %p190
      %p426 = pneg %p187
      %p427 = pneg %p211
      %p428 = pneg %p208
      %p429 = pneg %p232
      %p430 = pneg %p229
      %p431 = pneg %p253
      %p432 = pneg %p250
      %p433 = pneg %p281
      %p434 = pneg %p278
      %s435 = smul.u32 8, %s25
      %p436 = scmp.lt.s32.totalorder %s24, 1
      %s437 = scalar_select %p436, %s24, 1
      %p438 = scmp.lt.s32.totalorder %s435, 31
      %s439 = scalar_select %p438, %s435, 31
      %s440 = smul.addr %s437, 32
      %s441 = sadd.s32 %s439, %s440
      %s442 = smul.addr %s441, 8
      %s443 = scalar_lea.vmem %s9, %s442
      %s444 = smul.u32 %s25, 4
      %s445 = ssub.s32 %s444, 1
      %p446 = scmp.gt.s32.totalorder %s445, 0
      %s447 = scalar_select %p446, %s445, 0
      %s448 = smul.u32 2, %s447
      %p449 = scmp.lt.s32.totalorder %s24, 1
      %s450 = scalar_select %p449, %s24, 1
      %p451 = scmp.lt.s32.totalorder %s448, 31
      %s452 = scalar_select %p451, %s448, 31
      %s453 = smul.addr %s450, 32
      %s454 = sadd.s32 %s452, %s453
      %s455 = smul.addr %s454, 8
      %s456 = scalar_lea.vmem %s0, %s455
      %s457 = smul.u32 %s25, 4
      %s458 = ssub.s32 %s457, 1
      %p459 = scmp.gt.s32.totalorder %s458, 0
      %s460 = scalar_select %p459, %s458, 0
      %s461 = smul.u32 2, %s460
      %s462 = smul.u32 8, %s25
      %p463 = scmp.lt.s32.totalorder %s24, 1
      %s464 = scalar_select %p463, %s24, 1
      %p465 = scmp.lt.s32.totalorder %s462, 31
      %s466 = scalar_select %p465, %s462, 31
      %s467 = smul.addr %s464, 32
      %s468 = sadd.s32 %s466, %s467
      %s469 = smul.addr %s468, 8
      %s470 = scalar_lea.vmem %s1, %s469
      %s471 = smul.u32 8, %s25
      %s472 = smul.u32 %s25, 4
      %s473 = sadd.s32 %s472, 4
      %p474 = scmp.lt.s32.totalorder %s473, 15
      %s475 = scalar_select %p474, %s473, 15
      %s476 = smul.u32 2, %s475
      %p477 = scmp.lt.s32.totalorder %s24, 1
      %s478 = scalar_select %p477, %s24, 1
      %p479 = scmp.lt.s32.totalorder %s476, 31
      %s480 = scalar_select %p479, %s476, 31
      %s481 = smul.addr %s478, 32
      %s482 = sadd.s32 %s480, %s481
      %s483 = smul.addr %s482, 8
      %s484 = scalar_lea.vmem %s2, %s483
      %s485 = smul.u32 %s25, 4
      %s486 = sadd.s32 %s485, 4
      %p487 = scmp.lt.s32.totalorder %s486, 15
      %s488 = scalar_select %p487, %s486, 15
      %s489 = smul.u32 2, %s488
      %s490 = smul.u32 8, %s25
      %p491 = scmp.lt.s32.totalorder %s24, 1
      %s492 = scalar_select %p491, %s24, 1
      %p493 = scmp.lt.s32.totalorder %s490, 31
      %s494 = scalar_select %p493, %s490, 31
      %s495 = smul.addr %s492, 32
      %s496 = sadd.s32 %s494, %s495
      %s497 = smul.addr %s496, 8
      %s498 = scalar_lea.vmem %s9, %s497
      %s499 = smul.u32 8, %s25
      %v501 = vld [vmem:[%s470] sm:$0xff]
      %v502 = vld [vmem:[%s470 + $0x8] sm:$0xff]
      %v503 = vld [vmem:[%s470 + $0x10] sm:$0xff]
      %v504 = vld [vmem:[%s470 + $0x18] sm:$0xff]
      %v505 = vld [vmem:[%s470 + $0x20] sm:$0xff]
      %v506 = vld [vmem:[%s470 + $0x28] sm:$0xff]
      %v507 = vld [vmem:[%s470 + $0x30] sm:$0xff]
      %v508 = vld [vmem:[%s470 + $0x38] sm:$0xff]
      %v509 = vld [vmem:[%s456] sm:$0xff]
      %v510 = vld [vmem:[%s456 + $0x8] sm:$0xff]
      %v511 = vld [vmem:[%s484] sm:$0xff]
      %v512 = vld [vmem:[%s484 + $0x8] sm:$0xff]
      %v513 = vpack.c.bf16 %v510, %v509
      %v514 = vpack.c.bf16 %v502, %v501
      %v515 = vpack.c.bf16 %v504, %v503
      %v516 = vpack.c.bf16 %v506, %v505
      %v517 = vpack.c.bf16 %v508, %v507
      %v518 = vpack.c.bf16 %v512, %v511
      %v519 = vld [vmem:[%s3] sm:$0xff]
      %v520 = vld [vmem:[%s3 + $0x8] sm:$0xff]
      %v521 = vld [vmem:[%s3 + $0x10] sm:$0xff]
      %v522 = vld [vmem:[%s3 + $0x18] sm:$0xff]
      %v523 = vld [vmem:[%s4] sm:$0x3]
      %v525 = vlaneseq
      %v526 = vshrl.u32 %v525, 7
      %v527 = vsub.s32 0, %v526
      %v528 = vrot.slane %v523, %v527
      %v529 = vlaneseq
      %v530 = vshrl.u32 %v529, 7
      %v531 = vsub.s32 1, %v530
      %v532 = vrot.slane %v523, %v531
      %v539 = vunpack.c.l.b16 %v519
      %v540 = vunpack.c.h.b16 %v519
      %v541 = vunpack.c.l.b16 %v520
      %v542 = vunpack.c.h.b16 %v520
      %v543 = vunpack.c.l.b16 %v521
      %v544 = vunpack.c.h.b16 %v521
      %v545 = vunpack.c.l.b16 %v522
      %v546 = vunpack.c.h.b16 %v522
      %v547 = vpack.c.b16 %v541, %v539
      %v548 = vpack.c.b16 %v542, %v540
      %v549 = vpack.c.b16 %v545, %v543
      %v550 = vpack.c.b16 %v546, %v544
      %vm555 = vcmask 261120
      %v557 = vsel %vm555, %v513, 0
      %v560 = vsel %vm555, %v514, 0
      %v563 = vsel %vm555, %v515, 0
      %v566 = vsel %vm555, %v516, 0
      %v569 = vsel %vm555, %v517, 0
      %v572 = vsel %vm555, %v518, 0
      %574 = vmatprep.subr.bf16.mxu0 %v548
      %575 = vmatpush1.bf16.msra.mxu0 %v547
      %576 = vmatprep.subr.bf16.mxu0 %v550
      %577 = vmatpush1.bf16.msra.mxu0 %v549
      %578 = vmatprep.subr.bf16.mxu0 0
      %579 = vmatpush1.bf16.msra.mxu0 0
      %580 = vmatprep.subr.bf16.mxu0 0
      %581 = vmatpush1.bf16.msra.mxu0 0
      %582 = vmatprep.subr.bf16.mxu0 0
      %583 = vmatpush1.bf16.msra.mxu0 0
      %584 = vmatprep.subr.bf16.mxu0 0
      %585 = vmatpush1.bf16.msra.mxu0 0
      %586 = vmatprep.subr.bf16.mxu0 0
      %587 = vmatpush1.bf16.msra.mxu0 0
      %588 = vmatprep.subr.bf16.mxu0 0
      %589 = vmatpush1.bf16.msra.mxu0 0
      %590 = vmatprep.subr.bf16.mxu0 0
      %591 = vmatpush1.bf16.msra.mxu0 0
      %592 = vmatprep.subr.bf16.mxu0 0
      %593 = vmatpush1.bf16.msra.mxu0 0
      %594 = vmatprep.subr.bf16.mxu0 0
      %595 = vmatpush1.bf16.msra.mxu0 0
      %596 = vmatprep.subr.bf16.mxu0 0
      %597 = vmatpush1.bf16.msra.mxu0 0
      %598 = vmatprep.subr.bf16.mxu0 0
      %599 = vmatpush1.bf16.msra.mxu0 0
      %600 = vmatprep.subr.bf16.mxu0 0
      %601 = vmatpush1.bf16.msra.mxu0 0
      %602 = vmatprep.subr.bf16.mxu0 0
      %603 = vmatpush1.bf16.msra.mxu0 0
      %604 = vmatprep.subr.bf16.mxu0 0
      %605 = vmatpush1.bf16.msra.mxu0 0
      %606 = vmatprep.mubr.bf16.mxu0 0
      %607 = vmatmul.mubr.bf16.gmra.mrb[0].mxu0 %v557
      %v608 = vpop.f32.mrb[0].mxu0
      %v609 = vadd.f32 %v528, %v608
      %v610 = vpop.f32.mrb[0].mxu0
      %v611 = vadd.f32 %v532, %v610
      %v612 = vpop.f32.mrb[0].mxu0
      %v613 = vadd.f32 %v528, %v612
      %v614 = vpop.f32.mrb[0].mxu0
      %v615 = vadd.f32 %v532, %v614
      %616 = vmatprep.mubr.bf16.mxu0 0
      %617 = vmatmul.mubr.bf16.gmra.mrb[0].mxu0 %v560
      %v618 = vpop.f32.mrb[0].mxu0
      %v619 = vadd.f32 %v528, %v618
      %v620 = vpop.f32.mrb[0].mxu0
      %v621 = vadd.f32 %v532, %v620
      %v622 = vpop.f32.mrb[0].mxu0
      %v623 = vadd.f32 %v528, %v622
      %v624 = vpop.f32.mrb[0].mxu0
      %v625 = vadd.f32 %v532, %v624
      %626 = vmatprep.mubr.bf16.mxu0 0
      %627 = vmatmul.mubr.bf16.gmra.mrb[0].mxu0 %v563
      %v628 = vpop.f32.mrb[0].mxu0
      %v629 = vadd.f32 %v528, %v628
      %v630 = vpop.f32.mrb[0].mxu0
      %v631 = vadd.f32 %v532, %v630
      %v632 = vpop.f32.mrb[0].mxu0
      %v633 = vadd.f32 %v528, %v632
      %v634 = vpop.f32.mrb[0].mxu0
      %v635 = vadd.f32 %v532, %v634
      %636 = vmatprep.mubr.bf16.mxu0 0
      %637 = vmatmul.mubr.bf16.gmra.mrb[0].mxu0 %v566
      %v638 = vpop.f32.mrb[0].mxu0
      %v639 = vadd.f32 %v528, %v638
      %v640 = vpop.f32.mrb[0].mxu0
      %v641 = vadd.f32 %v532, %v640
      %v642 = vpop.f32.mrb[0].mxu0
      %v643 = vadd.f32 %v528, %v642
      %v644 = vpop.f32.mrb[0].mxu0
      %v645 = vadd.f32 %v532, %v644
      %646 = vmatprep.mubr.bf16.mxu0 0
      %647 = vmatmul.mubr.bf16.gmra.mrb[0].mxu0 %v569
      %v648 = vpop.f32.mrb[0].mxu0
      %v649 = vadd.f32 %v528, %v648
      %v650 = vpop.f32.mrb[0].mxu0
      %v651 = vadd.f32 %v532, %v650
      %v652 = vpop.f32.mrb[0].mxu0
      %v653 = vadd.f32 %v528, %v652
      %v654 = vpop.f32.mrb[0].mxu0
      %v655 = vadd.f32 %v532, %v654
      %656 = vmatprep.mubr.bf16.mxu0 0
      %657 = vmatmul.mubr.bf16.gmra.mrb[0].mxu0 %v572
      %v658 = vpop.f32.mrb[0].mxu0
      %v659 = vadd.f32 %v528, %v658
      %v660 = vpop.f32.mrb[0].mxu0
      %v661 = vadd.f32 %v532, %v660
      %v662 = vpop.f32.mrb[0].mxu0
      %v663 = vadd.f32 %v528, %v662
      %v664 = vpop.f32.mrb[0].mxu0
      %v665 = vadd.f32 %v532, %v664
      %666 = vdwg.mxu0
      %v667 = vmax.f32 %v609, 0.0
      %v668 = vmax.f32 %v611, 0.0
      %v669 = vmax.f32 %v613, 0.0
      %v670 = vmax.f32 %v615, 0.0
      %v671 = vmax.f32 %v619, 0.0
      %v672 = vmax.f32 %v621, 0.0
      %v673 = vmax.f32 %v623, 0.0
      %v674 = vmax.f32 %v625, 0.0
      %v675 = vmax.f32 %v629, 0.0
      %v676 = vmax.f32 %v631, 0.0
      %v677 = vmax.f32 %v633, 0.0
      %v678 = vmax.f32 %v635, 0.0
      %v679 = vmax.f32 %v639, 0.0
      %v680 = vmax.f32 %v641, 0.0
      %v681 = vmax.f32 %v643, 0.0
      %v682 = vmax.f32 %v645, 0.0
      %v683 = vmax.f32 %v649, 0.0
      %v684 = vmax.f32 %v651, 0.0
      %v685 = vmax.f32 %v653, 0.0
      %v686 = vmax.f32 %v655, 0.0
      %v687 = vmax.f32 %v659, 0.0
      %v688 = vmax.f32 %v661, 0.0
      %v689 = vmax.f32 %v663, 0.0
      %v690 = vmax.f32 %v665, 0.0
      %v691 = vpack.c.bf16 %v669, %v667
      %v692 = vpack.c.bf16 %v670, %v668
      %v693 = vpack.c.bf16 %v673, %v671
      %v694 = vpack.c.bf16 %v674, %v672
      %v695 = vpack.c.bf16 %v677, %v675
      %v696 = vpack.c.bf16 %v678, %v676
      %v697 = vpack.c.bf16 %v681, %v679
      %v698 = vpack.c.bf16 %v682, %v680
      %v699 = vpack.c.bf16 %v685, %v683
      %v700 = vpack.c.bf16 %v686, %v684
      %v701 = vpack.c.bf16 %v689, %v687
      %v702 = vpack.c.bf16 %v690, %v688
      %v703 = vld [vmem:[%s5] sm:$0xf]
      %v704 = vld [vmem:[%s5 + $0x4] sm:$0xf]
      %v705 = vld [vmem:[%s5 + $0x8] sm:$0xf]
      %v706 = vld [vmem:[%s5 + $0xc] sm:$0xf]
      %v707 = vld [vmem:[%s5 + $0x10] sm:$0xf]
      %v708 = vld [vmem:[%s5 + $0x14] sm:$0xf]
      %v709 = vld [vmem:[%s5 + $0x18] sm:$0xf]
      %v710 = vld [vmem:[%s5 + $0x1c] sm:$0xf]
      %v711 = vld [vmem:[%s5 + $0x20] sm:$0xf]
      %v712 = vld [vmem:[%s5 + $0x24] sm:$0xf]
      %v713 = vld [vmem:[%s5 + $0x28] sm:$0xf]
      %v714 = vld [vmem:[%s5 + $0x2c] sm:$0xf]
      %v715 = vld [vmem:[%s5 + $0x30] sm:$0xf]
      %v716 = vld [vmem:[%s5 + $0x34] sm:$0xf]
      %v717 = vld [vmem:[%s5 + $0x38] sm:$0xf]
      %v718 = vld [vmem:[%s5 + $0x3c] sm:$0xf]
      %v719 = vld [vmem:[%s5 + $0x40] sm:$0xf]
      %v720 = vld [vmem:[%s5 + $0x44] sm:$0xf]
      %v721 = vld [vmem:[%s5 + $0x48] sm:$0xf]
      %v722 = vld [vmem:[%s5 + $0x4c] sm:$0xf]
      %v723 = vld [vmem:[%s5 + $0x50] sm:$0xf]
      %v724 = vld [vmem:[%s5 + $0x54] sm:$0xf]
      %v725 = vld [vmem:[%s5 + $0x58] sm:$0xf]
      %v726 = vld [vmem:[%s5 + $0x5c] sm:$0xf]
      %v727 = vld [vmem:[%s6] sm:$0x1]
      %v729 = vlaneseq
      %v730 = vshrl.u32 %v729, 7
      %v731 = vsub.s32 0, %v730
      %v732 = vrot.slane %v727, %v731
      %v758 = vunpack.c.l.b16 %v703
      %v759 = vunpack.c.l.b16 %v704
      %v760 = vunpack.c.l.b16 %v705
      %v761 = vunpack.c.l.b16 %v706
      %v762 = vunpack.c.l.b16 %v707
      %v763 = vunpack.c.l.b16 %v708
      %v764 = vunpack.c.l.b16 %v709
      %v765 = vunpack.c.l.b16 %v710
      %v766 = vunpack.c.l.b16 %v711
      %v767 = vunpack.c.l.b16 %v712
      %v768 = vunpack.c.l.b16 %v713
      %v769 = vunpack.c.l.b16 %v714
      %v770 = vunpack.c.l.b16 %v715
      %v771 = vunpack.c.l.b16 %v716
      %v772 = vunpack.c.l.b16 %v717
      %v773 = vunpack.c.l.b16 %v718
      %v774 = vunpack.c.l.b16 %v719
      %v775 = vunpack.c.l.b16 %v720
      %v776 = vunpack.c.l.b16 %v721
      %v777 = vunpack.c.l.b16 %v722
      %v778 = vunpack.c.l.b16 %v723
      %v779 = vunpack.c.l.b16 %v724
      %v780 = vunpack.c.l.b16 %v725
      %v781 = vunpack.c.l.b16 %v726
      %v782 = vpack.c.b16 %v759, %v758
      %v783 = vpack.c.b16 %v761, %v760
      %v784 = vpack.c.b16 %v763, %v762
      %v785 = vpack.c.b16 %v765, %v764
      %v786 = vpack.c.b16 %v767, %v766
      %v787 = vpack.c.b16 %v769, %v768
      %v788 = vpack.c.b16 %v771, %v770
      %v789 = vpack.c.b16 %v773, %v772
      %v790 = vpack.c.b16 %v775, %v774
      %v791 = vpack.c.b16 %v777, %v776
      %v792 = vpack.c.b16 %v779, %v778
      %v793 = vpack.c.b16 %v781, %v780
      %vm806 = vcmask 523264
      %v808 = vsel %vm806, %v692, 0
      %v811 = vsel %vm806, %v694, 0
      %v814 = vsel %vm806, %v696, 0
      %v817 = vsel %vm806, %v698, 0
      %v820 = vsel %vm806, %v700, 0
      %v823 = vsel %vm806, %v702, 0
      %825 = vmatprep.subr.bf16.mxu0 0
      %826 = vmatpush1.bf16.msra.mxu0 %v782
      %827 = vmatprep.subr.bf16.mxu0 0
      %828 = vmatpush1.bf16.msra.mxu0 %v783
      %829 = vmatprep.subr.bf16.mxu0 0
      %830 = vmatpush1.bf16.msra.mxu0 %v784
      %831 = vmatprep.subr.bf16.mxu0 0
      %832 = vmatpush1.bf16.msra.mxu0 %v785
      %833 = vmatprep.subr.bf16.mxu0 0
      %834 = vmatpush1.bf16.msra.mxu0 %v786
      %835 = vmatprep.subr.bf16.mxu0 0
      %836 = vmatpush1.bf16.msra.mxu0 %v787
      %837 = vmatprep.subr.bf16.mxu0 0
      %838 = vmatpush1.bf16.msra.mxu0 %v788
      %839 = vmatprep.subr.bf16.mxu0 0
      %840 = vmatpush1.bf16.msra.mxu0 %v789
      %841 = vmatprep.subr.bf16.mxu0 0
      %842 = vmatpush1.bf16.msra.mxu0 %v790
      %843 = vmatprep.subr.bf16.mxu0 0
      %844 = vmatpush1.bf16.msra.mxu0 %v791
      %845 = vmatprep.subr.bf16.mxu0 0
      %846 = vmatpush1.bf16.msra.mxu0 %v792
      %847 = vmatprep.subr.bf16.mxu0 0
      %848 = vmatpush1.bf16.msra.mxu0 %v793
      %849 = vmatprep.subr.bf16.mxu0 0
      %850 = vmatpush1.bf16.msra.mxu0 0
      %851 = vmatprep.subr.bf16.mxu0 0
      %852 = vmatpush1.bf16.msra.mxu0 0
      %853 = vmatprep.subr.bf16.mxu0 0
      %854 = vmatpush1.bf16.msra.mxu0 0
      %855 = vmatprep.subr.bf16.mxu0 0
      %856 = vmatpush1.bf16.msra.mxu0 0
      %857 = vmatprep.mubr.bf16.mxu0 %v808
      %858 = vmatmul.mubr.bf16.gmra.mrb[0].mxu0 %v691
      %v859 = vpop.f32.mrb[0].mxu0
      %v860 = vadd.f32 %v732, %v859
      %v861 = vpop.f32.mrb[0].mxu0
      %v862 = vpop.f32.mrb[0].mxu0
      %v863 = vadd.f32 %v732, %v862
      %v864 = vpop.f32.mrb[0].mxu0
      %865 = vmatprep.mubr.bf16.mxu0 %v811
      %866 = vmatmul.mubr.bf16.gmra.mrb[0].mxu0 %v693
      %v867 = vpop.f32.mrb[0].mxu0
      %v868 = vadd.f32 %v732, %v867
      %v869 = vpop.f32.mrb[0].mxu0
      %v870 = vpop.f32.mrb[0].mxu0
      %v871 = vadd.f32 %v732, %v870
      %v872 = vpop.f32.mrb[0].mxu0
      %873 = vmatprep.mubr.bf16.mxu0 %v814
      %874 = vmatmul.mubr.bf16.gmra.mrb[0].mxu0 %v695
      %v875 = vpop.f32.mrb[0].mxu0
      %v876 = vadd.f32 %v732, %v875
      %v877 = vpop.f32.mrb[0].mxu0
      %v878 = vpop.f32.mrb[0].mxu0
      %v879 = vadd.f32 %v732, %v878
      %v880 = vpop.f32.mrb[0].mxu0
      %881 = vmatprep.mubr.bf16.mxu0 %v817
      %882 = vmatmul.mubr.bf16.gmra.mrb[0].mxu0 %v697
      %v883 = vpop.f32.mrb[0].mxu0
      %v884 = vadd.f32 %v732, %v883
      %v885 = vpop.f32.mrb[0].mxu0
      %v886 = vpop.f32.mrb[0].mxu0
      %v887 = vadd.f32 %v732, %v886
      %v888 = vpop.f32.mrb[0].mxu0
      %889 = vmatprep.mubr.bf16.mxu0 %v820
      %890 = vmatmul.mubr.bf16.gmra.mrb[0].mxu0 %v699
      %v891 = vpop.f32.mrb[0].mxu0
      %v892 = vadd.f32 %v732, %v891
      %v893 = vpop.f32.mrb[0].mxu0
      %v894 = vpop.f32.mrb[0].mxu0
      %v895 = vadd.f32 %v732, %v894
      %v896 = vpop.f32.mrb[0].mxu0
      %897 = vmatprep.mubr.bf16.mxu0 %v823
      %898 = vmatmul.mubr.bf16.gmra.mrb[0].mxu0 %v701
      %v899 = vpop.f32.mrb[0].mxu0
      %v900 = vadd.f32 %v732, %v899
      %v901 = vpop.f32.mrb[0].mxu0
      %v902 = vpop.f32.mrb[0].mxu0
      %v903 = vadd.f32 %v732, %v902
      %v904 = vpop.f32.mrb[0].mxu0
      %905 = vdwg.mxu0
      %v906 = vlaneseq
      %v907 = vshrl.u32 %v906, 7
      %v908 = vadd.s32 %v907, 8
      %v909 = vadd.s32 %v907, 16
      %v910 = vadd.s32 %v907, 24
      %v911 = vadd.s32 %v907, 32
      %v912 = vadd.s32 %v907, 40
      %v913 = vadd.s32 %v907, 48
      %v914 = vadd.s32 %v907, 56
      %v915 = vadd.s32 %v907, 64
      %v916 = vadd.s32 %v907, 72
      %v917 = vadd.s32 %v907, 80
      %v918 = vadd.s32 %v907, 88
      %p919 = scmp.gt.s32.totalorder %s25, 0
      %vm920 = vcmp.ge.s32.totalorder %v907, 16
      %vm921 = vcmp.ge.s32.totalorder %v908, 16
      %vm922 = vcmp.ge.s32.totalorder %v909, 16
      %vm923 = vcmp.ge.s32.totalorder %v910, 16
      %vm924 = vcmp.ge.s32.totalorder %v911, 16
      %vm925 = vcmp.ge.s32.totalorder %v912, 16
      %vm926 = vcmp.ge.s32.totalorder %v913, 16
      %vm927 = vcmp.ge.s32.totalorder %v914, 16
      %vm928 = vcmp.ge.s32.totalorder %v915, 16
      %vm929 = vcmp.ge.s32.totalorder %v916, 16
      %vm930 = vcmp.ge.s32.totalorder %v917, 16
      %vm931 = vcmp.ge.s32.totalorder %v918, 16
      %s932 = scalar_select %p919, 1, 0
      %v933 = vstv %s932
      %vm934 = vcmp.eq.s32.totalorder %v933, 1
      %vm935 = vmor %vm934, %vm920
      %vm936 = vmor %vm934, %vm921
      %vm937 = vmor %vm934, %vm922
      %vm938 = vmor %vm934, %vm923
      %vm939 = vmor %vm934, %vm924
      %vm940 = vmor %vm934, %vm925
      %vm941 = vmor %vm934, %vm926
      %vm942 = vmor %vm934, %vm927
      %vm943 = vmor %vm934, %vm928
      %vm944 = vmor %vm934, %vm929
      %vm945 = vmor %vm934, %vm930
      %vm946 = vmor %vm934, %vm931
      %p947 = scmp.lt.s32.totalorder %s25, 3
      %vm948 = vcmp.lt.s32.totalorder %v907, 80
      %vm949 = vcmp.lt.s32.totalorder %v908, 80
      %vm950 = vcmp.lt.s32.totalorder %v909, 80
      %vm951 = vcmp.lt.s32.totalorder %v910, 80
      %vm952 = vcmp.lt.s32.totalorder %v911, 80
      %vm953 = vcmp.lt.s32.totalorder %v912, 80
      %vm954 = vcmp.lt.s32.totalorder %v913, 80
      %vm955 = vcmp.lt.s32.totalorder %v914, 80
      %vm956 = vcmp.lt.s32.totalorder %v915, 80
      %vm957 = vcmp.lt.s32.totalorder %v916, 80
      %vm958 = vcmp.lt.s32.totalorder %v917, 80
      %vm959 = vcmp.lt.s32.totalorder %v918, 80
      %s960 = scalar_select %p947, 1, 0
      %v961 = vstv %s960
      %vm962 = vcmp.eq.s32.totalorder %v961, 1
      %vm963 = vmor %vm962, %vm948
      %vm964 = vmor %vm962, %vm949
      %vm965 = vmor %vm962, %vm950
      %vm966 = vmor %vm962, %vm951
      %vm967 = vmor %vm962, %vm952
      %vm968 = vmor %vm962, %vm953
      %vm969 = vmor %vm962, %vm954
      %vm970 = vmor %vm962, %vm955
      %vm971 = vmor %vm962, %vm956
      %vm972 = vmor %vm962, %vm957
      %vm973 = vmor %vm962, %vm958
      %vm974 = vmor %vm962, %vm959
      %vm975 = vmand %vm935, %vm963
      %vm976 = vmand %vm936, %vm964
      %vm977 = vmand %vm937, %vm965
      %vm978 = vmand %vm938, %vm966
      %vm979 = vmand %vm939, %vm967
      %vm980 = vmand %vm940, %vm968
      %vm981 = vmand %vm941, %vm969
      %vm982 = vmand %vm942, %vm970
      %vm983 = vmand %vm943, %vm971
      %vm984 = vmand %vm944, %vm972
      %vm985 = vmand %vm945, %vm973
      %vm986 = vmand %vm946, %vm974
      %v987 = vsel %vm975, 1, 0
      %v988 = vsel %vm976, 1, 0
      %v989 = vsel %vm977, 1, 0
      %v990 = vsel %vm978, 1, 0
      %v991 = vsel %vm979, 1, 0
      %v992 = vsel %vm980, 1, 0
      %v993 = vsel %vm981, 1, 0
      %v994 = vsel %vm982, 1, 0
      %v995 = vsel %vm983, 1, 0
      %v996 = vsel %vm984, 1, 0
      %v997 = vsel %vm985, 1, 0
      %v998 = vsel %vm986, 1, 0
      %vm999 = vcmp.eq.s32.totalorder %v987, 1
      %vm1000 = vcmp.eq.s32.totalorder %v988, 1
      %vm1001 = vcmp.eq.s32.totalorder %v989, 1
      %vm1002 = vcmp.eq.s32.totalorder %v990, 1
      %vm1003 = vcmp.eq.s32.totalorder %v991, 1
      %vm1004 = vcmp.eq.s32.totalorder %v992, 1
      %vm1005 = vcmp.eq.s32.totalorder %v993, 1
      %vm1006 = vcmp.eq.s32.totalorder %v994, 1
      %vm1007 = vcmp.eq.s32.totalorder %v995, 1
      %vm1008 = vcmp.eq.s32.totalorder %v996, 1
      %vm1009 = vcmp.eq.s32.totalorder %v997, 1
      %vm1010 = vcmp.eq.s32.totalorder %v998, 1
      %v1011 = vsel %vm999, %v860, 0.0
      %v1012 = vsel %vm1000, %v863, 0.0
      %v1013 = vsel %vm1001, %v868, 0.0
      %v1014 = vsel %vm1002, %v871, 0.0
      %v1015 = vsel %vm1003, %v876, 0.0
      %v1016 = vsel %vm1004, %v879, 0.0
      %v1017 = vsel %vm1005, %v884, 0.0
      %v1018 = vsel %vm1006, %v887, 0.0
      %v1019 = vsel %vm1007, %v892, 0.0
      %v1020 = vsel %vm1008, %v895, 0.0
      %v1021 = vsel %vm1009, %v900, 0.0
      %v1022 = vsel %vm1010, %v903, 0.0
      %vm1023 = vcmp.lt.s32.totalorder %v907, 0
      %v1024 = vsub.s32 0, %v907
      %v1025 = vsel %vm1023, %v1024, %v907
      %v1026 = vshrl.u32 %v1025, 4
      %v1027 = vand.u32 %v1025, 15
      %v1028 = vsub.s32 0, %v1027
      %v1029 = vsel %vm1023, %v1028, %v1027
      %vm1030 = vcmp.lt.s32.totalorder %v908, 0
      %v1031 = vsub.s32 0, %v908
      %v1032 = vsel %vm1030, %v1031, %v908
      %v1033 = vshrl.u32 %v1032, 4
      %v1034 = vand.u32 %v1032, 15
      %v1035 = vsub.s32 0, %v1034
      %v1036 = vsel %vm1030, %v1035, %v1034
      %vm1037 = vcmp.lt.s32.totalorder %v909, 0
      %v1038 = vsub.s32 0, %v909
      %v1039 = vsel %vm1037, %v1038, %v909
      %v1040 = vshrl.u32 %v1039, 4
      %v1041 = vand.u32 %v1039, 15
      %v1042 = vsub.s32 0, %v1041
      %v1043 = vsel %vm1037, %v1042, %v1041
      %vm1044 = vcmp.lt.s32.totalorder %v910, 0
      %v1045 = vsub.s32 0, %v910
      %v1046 = vsel %vm1044, %v1045, %v910
      %v1047 = vshrl.u32 %v1046, 4
      %v1048 = vand.u32 %v1046, 15
      %v1049 = vsub.s32 0, %v1048
      %v1050 = vsel %vm1044, %v1049, %v1048
      %vm1051 = vcmp.lt.s32.totalorder %v911, 0
      %v1052 = vsub.s32 0, %v911
      %v1053 = vsel %vm1051, %v1052, %v911
      %v1054 = vshrl.u32 %v1053, 4
      %v1055 = vand.u32 %v1053, 15
      %v1056 = vsub.s32 0, %v1055
      %v1057 = vsel %vm1051, %v1056, %v1055
      %vm1058 = vcmp.lt.s32.totalorder %v912, 0
      %v1059 = vsub.s32 0, %v912
      %v1060 = vsel %vm1058, %v1059, %v912
      %v1061 = vshrl.u32 %v1060, 4
      %v1062 = vand.u32 %v1060, 15
      %v1063 = vsub.s32 0, %v1062
      %v1064 = vsel %vm1058, %v1063, %v1062
      %vm1065 = vcmp.lt.s32.totalorder %v913, 0
      %v1066 = vsub.s32 0, %v913
      %v1067 = vsel %vm1065, %v1066, %v913
      %v1068 = vshrl.u32 %v1067, 4
      %v1069 = vand.u32 %v1067, 15
      %v1070 = vsub.s32 0, %v1069
      %v1071 = vsel %vm1065, %v1070, %v1069
      %vm1072 = vcmp.lt.s32.totalorder %v914, 0
      %v1073 = vsub.s32 0, %v914
      %v1074 = vsel %vm1072, %v1073, %v914
      %v1075 = vshrl.u32 %v1074, 4
      %v1076 = vand.u32 %v1074, 15
      %v1077 = vsub.s32 0, %v1076
      %v1078 = vsel %vm1072, %v1077, %v1076
      %vm1079 = vcmp.lt.s32.totalorder %v915, 0
      %v1080 = vsub.s32 0, %v915
      %v1081 = vsel %vm1079, %v1080, %v915
      %v1082 = vshrl.u32 %v1081, 4
      %v1083 = vand.u32 %v1081, 15
      %v1084 = vsub.s32 0, %v1083
      %v1085 = vsel %vm1079, %v1084, %v1083
      %vm1086 = vcmp.lt.s32.totalorder %v916, 0
      %v1087 = vsub.s32 0, %v916
      %v1088 = vsel %vm1086, %v1087, %v916
      %v1089 = vshrl.u32 %v1088, 4
      %v1090 = vand.u32 %v1088, 15
      %v1091 = vsub.s32 0, %v1090
      %v1092 = vsel %vm1086, %v1091, %v1090
      %vm1093 = vcmp.lt.s32.totalorder %v917, 0
      %v1094 = vsub.s32 0, %v917
      %v1095 = vsel %vm1093, %v1094, %v917
      %v1096 = vshrl.u32 %v1095, 4
      %v1097 = vand.u32 %v1095, 15
      %v1098 = vsub.s32 0, %v1097
      %v1099 = vsel %vm1093, %v1098, %v1097
      %vm1100 = vcmp.lt.s32.totalorder %v918, 0
      %v1101 = vsub.s32 0, %v918
      %v1102 = vsel %vm1100, %v1101, %v918
      %v1103 = vshrl.u32 %v1102, 4
      %v1104 = vand.u32 %v1102, 15
      %v1105 = vsub.s32 0, %v1104
      %v1106 = vsel %vm1100, %v1105, %v1104
      %vm1107 = vcmp.ne.s32.totalorder %v1029, 0
      %vm1108 = vcmp.ne.s32.totalorder %v1036, 0
      %vm1109 = vcmp.ne.s32.totalorder %v1043, 0
      %vm1110 = vcmp.ne.s32.totalorder %v1050, 0
      %vm1111 = vcmp.ne.s32.totalorder %v1057, 0
      %vm1112 = vcmp.ne.s32.totalorder %v1064, 0
      %vm1113 = vcmp.ne.s32.totalorder %v1071, 0
      %vm1114 = vcmp.ne.s32.totalorder %v1078, 0
      %vm1115 = vcmp.ne.s32.totalorder %v1085, 0
      %vm1116 = vcmp.ne.s32.totalorder %v1092, 0
      %vm1117 = vcmp.ne.s32.totalorder %v1099, 0
      %vm1118 = vcmp.ne.s32.totalorder %v1106, 0
      %vm1119 = vcmp.lt.s32.totalorder %v1029, 0
      %vm1120 = vcmp.lt.s32.totalorder %v1036, 0
      %vm1121 = vcmp.lt.s32.totalorder %v1043, 0
      %vm1122 = vcmp.lt.s32.totalorder %v1050, 0
      %vm1123 = vcmp.lt.s32.totalorder %v1057, 0
      %vm1124 = vcmp.lt.s32.totalorder %v1064, 0
      %vm1125 = vcmp.lt.s32.totalorder %v1071, 0
      %vm1126 = vcmp.lt.s32.totalorder %v1078, 0
      %vm1127 = vcmp.lt.s32.totalorder %v1085, 0
      %vm1128 = vcmp.lt.s32.totalorder %v1092, 0
      %vm1129 = vcmp.lt.s32.totalorder %v1099, 0
      %vm1130 = vcmp.lt.s32.totalorder %v1106, 0
      %vm1131 = vmand %vm1119, %vm1107
      %vm1132 = vmand %vm1120, %vm1108
      %vm1133 = vmand %vm1121, %vm1109
      %vm1134 = vmand %vm1122, %vm1110
      %vm1135 = vmand %vm1123, %vm1111
      %vm1136 = vmand %vm1124, %vm1112
      %vm1137 = vmand %vm1125, %vm1113
      %vm1138 = vmand %vm1126, %vm1114
      %vm1139 = vmand %vm1127, %vm1115
      %vm1140 = vmand %vm1128, %vm1116
      %vm1141 = vmand %vm1129, %vm1117
      %vm1142 = vmand %vm1130, %vm1118
      %v1143 = vadd.s32 %v1029, 16
      %v1144 = vadd.s32 %v1036, 16
      %v1145 = vadd.s32 %v1043, 16
      %v1146 = vadd.s32 %v1050, 16
      %v1147 = vadd.s32 %v1057, 16
      %v1148 = vadd.s32 %v1064, 16
      %v1149 = vadd.s32 %v1071, 16
      %v1150 = vadd.s32 %v1078, 16
      %v1151 = vadd.s32 %v1085, 16
      %v1152 = vadd.s32 %v1092, 16
      %v1153 = vadd.s32 %v1099, 16
      %v1154 = vadd.s32 %v1106, 16
      %v1155 = vsel %vm1131, %v1143, %v1029
      %v1156 = vsel %vm1132, %v1144, %v1036
      %v1157 = vsel %vm1133, %v1145, %v1043
      %v1158 = vsel %vm1134, %v1146, %v1050
      %v1159 = vsel %vm1135, %v1147, %v1057
      %v1160 = vsel %vm1136, %v1148, %v1064
      %v1161 = vsel %vm1137, %v1149, %v1071
      %v1162 = vsel %vm1138, %v1150, %v1078
      %v1163 = vsel %vm1139, %v1151, %v1085
      %v1164 = vsel %vm1140, %v1152, %v1092
      %v1165 = vsel %vm1141, %v1153, %v1099
      %v1166 = vsel %vm1142, %v1154, %v1106
      %vm1167 = vcmp.ge.s32.totalorder %v1155, 1
      %vm1168 = vcmp.ge.s32.totalorder %v1156, 1
      %vm1169 = vcmp.ge.s32.totalorder %v1157, 1
      %vm1170 = vcmp.ge.s32.totalorder %v1158, 1
      %vm1171 = vcmp.ge.s32.totalorder %v1159, 1
      %vm1172 = vcmp.ge.s32.totalorder %v1160, 1
      %vm1173 = vcmp.ge.s32.totalorder %v1161, 1
      %vm1174 = vcmp.ge.s32.totalorder %v1162, 1
      %vm1175 = vcmp.ge.s32.totalorder %v1163, 1
      %vm1176 = vcmp.ge.s32.totalorder %v1164, 1
      %vm1177 = vcmp.ge.s32.totalorder %v1165, 1
      %vm1178 = vcmp.ge.s32.totalorder %v1166, 1
      %v1179 = vrot.slane %v1011, 7
      %v1180 = vrot.slane %v1012, 7
      %v1181 = vrot.slane %v1013, 7
      %v1182 = vrot.slane %v1014, 7
      %v1183 = vrot.slane %v1015, 7
      %v1184 = vrot.slane %v1016, 7
      %v1185 = vrot.slane %v1017, 7
      %v1186 = vrot.slane %v1018, 7
      %v1187 = vrot.slane %v1019, 7
      %v1188 = vrot.slane %v1020, 7
      %v1189 = vrot.slane %v1021, 7
      %v1190 = vrot.slane %v1022, 7
      %vm1191 = vcmp.lt.s32.totalorder %v907, 1
      %v1192 = vsel %vm1191, %v1189, %v1190
      %v1193 = vsel %vm1191, %v1188, %v1189
      %v1194 = vsel %vm1191, %v1187, %v1188
      %v1195 = vsel %vm1191, %v1186, %v1187
      %v1196 = vsel %vm1191, %v1185, %v1186
      %v1197 = vsel %vm1191, %v1184, %v1185
      %v1198 = vsel %vm1191, %v1183, %v1184
      %v1199 = vsel %vm1191, %v1182, %v1183
      %v1200 = vsel %vm1191, %v1181, %v1182
      %v1201 = vsel %vm1191, %v1180, %v1181
      %v1202 = vsel %vm1191, %v1179, %v1180
      %v1203 = vsel %vm1191, %v1190, %v1179
      %v1204 = vsel %vm1167, 1, 0
      %v1205 = vsel %vm1168, 1, 0
      %v1206 = vsel %vm1169, 1, 0
      %v1207 = vsel %vm1170, 1, 0
      %v1208 = vsel %vm1171, 1, 0
      %v1209 = vsel %vm1172, 1, 0
      %v1210 = vsel %vm1173, 1, 0
      %v1211 = vsel %vm1174, 1, 0
      %v1212 = vsel %vm1175, 1, 0
      %v1213 = vsel %vm1176, 1, 0
      %v1214 = vsel %vm1177, 1, 0
      %v1215 = vsel %vm1178, 1, 0
      %vm1216 = vcmp.eq.s32.totalorder %v1204, 1
      %vm1217 = vcmp.eq.s32.totalorder %v1205, 1
      %vm1218 = vcmp.eq.s32.totalorder %v1206, 1
      %vm1219 = vcmp.eq.s32.totalorder %v1207, 1
      %vm1220 = vcmp.eq.s32.totalorder %v1208, 1
      %vm1221 = vcmp.eq.s32.totalorder %v1209, 1
      %vm1222 = vcmp.eq.s32.totalorder %v1210, 1
      %vm1223 = vcmp.eq.s32.totalorder %v1211, 1
      %vm1224 = vcmp.eq.s32.totalorder %v1212, 1
      %vm1225 = vcmp.eq.s32.totalorder %v1213, 1
      %vm1226 = vcmp.eq.s32.totalorder %v1214, 1
      %vm1227 = vcmp.eq.s32.totalorder %v1215, 1
      %v1228 = vsel %vm1216, %v1203, 0.0
      %v1229 = vsel %vm1217, %v1202, 0.0
      %v1230 = vsel %vm1218, %v1201, 0.0
      %v1231 = vsel %vm1219, %v1200, 0.0
      %v1232 = vsel %vm1220, %v1199, 0.0
      %v1233 = vsel %vm1221, %v1198, 0.0
      %v1234 = vsel %vm1222, %v1197, 0.0
      %v1235 = vsel %vm1223, %v1196, 0.0
      %v1236 = vsel %vm1224, %v1195, 0.0
      %v1237 = vsel %vm1225, %v1194, 0.0
      %v1238 = vsel %vm1226, %v1193, 0.0
      %v1239 = vsel %vm1227, %v1192, 0.0
      %vm1240 = vcmp.le.s32.totalorder %v1155, 14
      %vm1241 = vcmp.le.s32.totalorder %v1156, 14
      %vm1242 = vcmp.le.s32.totalorder %v1157, 14
      %vm1243 = vcmp.le.s32.totalorder %v1158, 14
      %vm1244 = vcmp.le.s32.totalorder %v1159, 14
      %vm1245 = vcmp.le.s32.totalorder %v1160, 14
      %vm1246 = vcmp.le.s32.totalorder %v1161, 14
      %vm1247 = vcmp.le.s32.totalorder %v1162, 14
      %vm1248 = vcmp.le.s32.totalorder %v1163, 14
      %vm1249 = vcmp.le.s32.totalorder %v1164, 14
      %vm1250 = vcmp.le.s32.totalorder %v1165, 14
      %vm1251 = vcmp.le.s32.totalorder %v1166, 14
      %v1252 = vrot.slane %v1011, 1
      %v1253 = vrot.slane %v1012, 1
      %v1254 = vrot.slane %v1013, 1
      %v1255 = vrot.slane %v1014, 1
      %v1256 = vrot.slane %v1015, 1
      %v1257 = vrot.slane %v1016, 1
      %v1258 = vrot.slane %v1017, 1
      %v1259 = vrot.slane %v1018, 1
      %v1260 = vrot.slane %v1019, 1
      %v1261 = vrot.slane %v1020, 1
      %v1262 = vrot.slane %v1021, 1
      %v1263 = vrot.slane %v1022, 1
      %vm1264 = vcmp.lt.s32.totalorder %v907, 7
      %v1265 = vsel %vm1264, %v1262, %v1263
      %v1266 = vsel %vm1264, %v1261, %v1262
      %v1267 = vsel %vm1264, %v1260, %v1261
      %v1268 = vsel %vm1264, %v1259, %v1260
      %v1269 = vsel %vm1264, %v1258, %v1259
      %v1270 = vsel %vm1264, %v1257, %v1258
      %v1271 = vsel %vm1264, %v1256, %v1257
      %v1272 = vsel %vm1264, %v1255, %v1256
      %v1273 = vsel %vm1264, %v1254, %v1255
      %v1274 = vsel %vm1264, %v1253, %v1254
      %v1275 = vsel %vm1264, %v1252, %v1253
      %v1276 = vsel %vm1264, %v1263, %v1252
      %v1277 = vsel %vm1240, 1, 0
      %v1278 = vsel %vm1241, 1, 0
      %v1279 = vsel %vm1242, 1, 0
      %v1280 = vsel %vm1243, 1, 0
      %v1281 = vsel %vm1244, 1, 0
      %v1282 = vsel %vm1245, 1, 0
      %v1283 = vsel %vm1246, 1, 0
      %v1284 = vsel %vm1247, 1, 0
      %v1285 = vsel %vm1248, 1, 0
      %v1286 = vsel %vm1249, 1, 0
      %v1287 = vsel %vm1250, 1, 0
      %v1288 = vsel %vm1251, 1, 0
      %vm1289 = vcmp.eq.s32.totalorder %v1277, 1
      %vm1290 = vcmp.eq.s32.totalorder %v1278, 1
      %vm1291 = vcmp.eq.s32.totalorder %v1279, 1
      %vm1292 = vcmp.eq.s32.totalorder %v1280, 1
      %vm1293 = vcmp.eq.s32.totalorder %v1281, 1
      %vm1294 = vcmp.eq.s32.totalorder %v1282, 1
      %vm1295 = vcmp.eq.s32.totalorder %v1283, 1
      %vm1296 = vcmp.eq.s32.totalorder %v1284, 1
      %vm1297 = vcmp.eq.s32.totalorder %v1285, 1
      %vm1298 = vcmp.eq.s32.totalorder %v1286, 1
      %vm1299 = vcmp.eq.s32.totalorder %v1287, 1
      %vm1300 = vcmp.eq.s32.totalorder %v1288, 1
      %v1301 = vsel %vm1289, %v1275, 0.0
      %v1302 = vsel %vm1290, %v1274, 0.0
      %v1303 = vsel %vm1291, %v1273, 0.0
      %v1304 = vsel %vm1292, %v1272, 0.0
      %v1305 = vsel %vm1293, %v1271, 0.0
      %v1306 = vsel %vm1294, %v1270, 0.0
      %v1307 = vsel %vm1295, %v1269, 0.0
      %v1308 = vsel %vm1296, %v1268, 0.0
      %v1309 = vsel %vm1297, %v1267, 0.0
      %v1310 = vsel %vm1298, %v1266, 0.0
      %v1311 = vsel %vm1299, %v1265, 0.0
      %v1312 = vsel %vm1300, %v1276, 0.0
      %v1313 = vpack.c.bf16 %v1229, %v1228
      %v1314 = vpack.c.bf16 %v1231, %v1230
      %v1315 = vpack.c.bf16 %v1233, %v1232
      %v1316 = vpack.c.bf16 %v1235, %v1234
      %v1317 = vpack.c.bf16 %v1237, %v1236
      %v1318 = vpack.c.bf16 %v1239, %v1238
      %v1319 = vpack.c.bf16 %v1012, %v1011
      %v1320 = vpack.c.bf16 %v1014, %v1013
      %v1321 = vpack.c.bf16 %v1016, %v1015
      %v1322 = vpack.c.bf16 %v1018, %v1017
      %v1323 = vpack.c.bf16 %v1020, %v1019
      %v1324 = vpack.c.bf16 %v1022, %v1021
      %v1325 = vpack.c.bf16 %v1302, %v1301
      %v1326 = vpack.c.bf16 %v1304, %v1303
      %v1327 = vpack.c.bf16 %v1306, %v1305
      %v1328 = vpack.c.bf16 %v1308, %v1307
      %v1329 = vpack.c.bf16 %v1310, %v1309
      %v1330 = vpack.c.bf16 %v1312, %v1311
      %1337 = vrot.lane.b32.xlu0 %v1319, 32
      %v1338 = vpop.permute.xlu0 %1337
      %1339 = vrot.lane.b32.xlu0 %v1320, 32
      %v1340 = vpop.permute.xlu0 %1339
      %1341 = vrot.lane.b32.xlu0 %v1321, 32
      %v1342 = vpop.permute.xlu0 %1341
      %1343 = vrot.lane.b32.xlu0 %v1322, 32
      %v1344 = vpop.permute.xlu0 %1343
      %1345 = vrot.lane.b32.xlu0 %v1323, 32
      %v1346 = vpop.permute.xlu0 %1345
      %1347 = vrot.lane.b32.xlu0 %v1324, 32
      %v1348 = vpop.permute.xlu0 %1347
      %1355 = vrot.lane.b32.xlu0 %v1325, 64
      %v1356 = vpop.permute.xlu0 %1355
      %1357 = vrot.lane.b32.xlu0 %v1326, 64
      %v1358 = vpop.permute.xlu0 %1357
      %1359 = vrot.lane.b32.xlu0 %v1327, 64
      %v1360 = vpop.permute.xlu0 %1359
      %1361 = vrot.lane.b32.xlu0 %v1328, 64
      %v1362 = vpop.permute.xlu0 %1361
      %1363 = vrot.lane.b32.xlu0 %v1329, 64
      %v1364 = vpop.permute.xlu0 %1363
      %1365 = vrot.lane.b32.xlu0 %v1330, 64
      %v1366 = vpop.permute.xlu0 %1365
      %v1369 = vsel %vm555, %v1313, %v1338
      %v1372 = vsel %vm555, %v1314, %v1340
      %v1375 = vsel %vm555, %v1315, %v1342
      %v1378 = vsel %vm555, %v1316, %v1344
      %v1381 = vsel %vm555, %v1317, %v1346
      %v1384 = vsel %vm555, %v1318, %v1348
      %v1386 = vsel %vm806, %v1369, %v1356
      %v1388 = vsel %vm806, %v1372, %v1358
      %v1390 = vsel %vm806, %v1375, %v1360
      %v1392 = vsel %vm806, %v1378, %v1362
      %v1394 = vsel %vm806, %v1381, %v1364
      %v1396 = vsel %vm806, %v1384, %v1366
      %v1397 = vld [vmem:[%s8] sm:$0x1]
      %v1398 = vld [vmem:[%s7] sm:$0xf]
      %v1399 = vld [vmem:[%s7 + $0x4] sm:$0xf]
      %v1400 = vld [vmem:[%s7 + $0x8] sm:$0xf]
      %v1401 = vld [vmem:[%s7 + $0xc] sm:$0xf]
      %v1402 = vld [vmem:[%s7 + $0x10] sm:$0xf]
      %v1403 = vld [vmem:[%s7 + $0x14] sm:$0xf]
      %v1404 = vld [vmem:[%s7 + $0x18] sm:$0xf]
      %v1405 = vld [vmem:[%s7 + $0x1c] sm:$0xf]
      %v1406 = vld [vmem:[%s7 + $0x20] sm:$0xf]
      %v1407 = vld [vmem:[%s7 + $0x24] sm:$0xf]
      %v1408 = vld [vmem:[%s7 + $0x28] sm:$0xf]
      %v1409 = vld [vmem:[%s7 + $0x2c] sm:$0xf]
      %v1422 = vunpack.c.l.b16 %v1398
      %v1423 = vunpack.c.l.b16 %v1399
      %v1424 = vunpack.c.l.b16 %v1400
      %v1425 = vunpack.c.l.b16 %v1401
      %v1426 = vunpack.c.l.b16 %v1402
      %v1427 = vunpack.c.l.b16 %v1403
      %v1428 = vunpack.c.l.b16 %v1404
      %v1429 = vunpack.c.l.b16 %v1405
      %v1430 = vunpack.c.l.b16 %v1406
      %v1431 = vunpack.c.l.b16 %v1407
      %v1432 = vunpack.c.l.b16 %v1408
      %v1433 = vunpack.c.l.b16 %v1409
      %v1434 = vpack.c.b16 %v1423, %v1422
      %v1435 = vpack.c.b16 %v1425, %v1424
      %v1436 = vpack.c.b16 %v1427, %v1426
      %v1437 = vpack.c.b16 %v1429, %v1428
      %v1438 = vpack.c.b16 %v1431, %v1430
      %v1439 = vpack.c.b16 %v1433, %v1432
      %vm1446 = vcmask 785408
      %v1447 = vsel %vm1446, %v1386, 0
      %v1449 = vsel %vm1446, %v1388, 0
      %v1451 = vsel %vm1446, %v1390, 0
      %v1453 = vsel %vm1446, %v1392, 0
      %1455 = vmatprep.subr.bf16.mxu0 0
      %1456 = vmatpush1.bf16.msra.mxu0 %v1434
      %1457 = vmatprep.subr.bf16.mxu0 0
      %1458 = vmatpush1.bf16.msra.mxu0 %v1435
      %1459 = vmatprep.subr.bf16.mxu0 0
      %1460 = vmatpush1.bf16.msra.mxu0 %v1436
      %1461 = vmatprep.subr.bf16.mxu0 0
      %1462 = vmatpush1.bf16.msra.mxu0 %v1437
      %1463 = vmatprep.subr.bf16.mxu0 0
      %1464 = vmatpush1.bf16.msra.mxu0 %v1438
      %1465 = vmatprep.subr.bf16.mxu0 0
      %1466 = vmatpush1.bf16.msra.mxu0 %v1439
      %1467 = vmatprep.subr.bf16.mxu0 0
      %1468 = vmatpush1.bf16.msra.mxu0 0
      %1469 = vmatprep.subr.bf16.mxu0 0
      %1470 = vmatpush1.bf16.msra.mxu0 0
      %1471 = vmatprep.subr.bf16.mxu0 0
      %1472 = vmatpush1.bf16.msra.mxu0 0
      %1473 = vmatprep.subr.bf16.mxu0 0
      %1474 = vmatpush1.bf16.msra.mxu0 0
      %1475 = vmatprep.subr.bf16.mxu0 0
      %1476 = vmatpush1.bf16.msra.mxu0 0
      %1477 = vmatprep.subr.bf16.mxu0 0
      %1478 = vmatpush1.bf16.msra.mxu0 0
      %1479 = vmatprep.subr.bf16.mxu0 0
      %1480 = vmatpush1.bf16.msra.mxu0 0
      %1481 = vmatprep.subr.bf16.mxu0 0
      %1482 = vmatpush1.bf16.msra.mxu0 0
      %1483 = vmatprep.subr.bf16.mxu0 0
      %1484 = vmatpush1.bf16.msra.mxu0 0
      %1485 = vmatprep.subr.bf16.mxu0 0
      %1486 = vmatpush1.bf16.msra.mxu0 0
      %1487 = vmatprep.mubr.bf16.mxu0 0
      %1488 = vmatmul.mubr.bf16.gmra.mrb[0].mxu0 %v1447
      %v1489 = vpop.f32.mrb[0].mxu0
      %v1490 = vadd.f32 0.0, %v1489
      %v1491 = vpop.f32.mrb[0].mxu0
      %v1492 = vpop.f32.mrb[0].mxu0
      %v1493 = vadd.f32 0.0, %v1492
      %v1494 = vpop.f32.mrb[0].mxu0
      %1495 = vmatprep.mubr.bf16.mxu0 0
      %1496 = vmatmul.mubr.bf16.gmra.mrb[0].mxu0 %v1449
      %v1497 = vpop.f32.mrb[0].mxu0
      %v1498 = vadd.f32 0.0, %v1497
      %v1499 = vpop.f32.mrb[0].mxu0
      %v1500 = vpop.f32.mrb[0].mxu0
      %v1501 = vadd.f32 0.0, %v1500
      %v1502 = vpop.f32.mrb[0].mxu0
      %1503 = vmatprep.mubr.bf16.mxu0 0
      %1504 = vmatmul.mubr.bf16.gmra.mrb[0].mxu0 %v1451
      %v1505 = vpop.f32.mrb[0].mxu0
      %v1506 = vadd.f32 0.0, %v1505
      %v1507 = vpop.f32.mrb[0].mxu0
      %v1508 = vpop.f32.mrb[0].mxu0
      %v1509 = vadd.f32 0.0, %v1508
      %v1510 = vpop.f32.mrb[0].mxu0
      %1511 = vmatprep.mubr.bf16.mxu0 0
      %1512 = vmatmul.mubr.bf16.gmra.mrb[0].mxu0 %v1453
      %v1513 = vpop.f32.mrb[0].mxu0
      %v1514 = vadd.f32 0.0, %v1513
      %v1515 = vpop.f32.mrb[0].mxu0
      %v1516 = vpop.f32.mrb[0].mxu0
      %v1517 = vadd.f32 0.0, %v1516
      %v1518 = vpop.f32.mrb[0].mxu0
      %1519 = vdwg.mxu0
      %v1521 = vlaneseq
      %v1522 = vshrl.u32 %v1521, 7
      %v1523 = vsub.s32 0, %v1522
      %v1524 = vrot.slane %v1397, %v1523
      %v1526 = vadd.f32 %v1524, %v1490
      %v1527 = vadd.f32 %v1524, %v1493
      %v1528 = vadd.f32 %v1524, %v1498
      %v1529 = vadd.f32 %v1524, %v1501
      %v1530 = vadd.f32 %v1524, %v1506
      %v1531 = vadd.f32 %v1524, %v1509
      %v1532 = vadd.f32 %v1524, %v1514
      %v1533 = vadd.f32 %v1524, %v1517
      %s1534 = scalar_lea.vmem %s7, 48
      %v1535 = vld [vmem:[%s1534] sm:$0xf]
      %v1536 = vld [vmem:[%s1534 + $0x4] sm:$0xf]
      %v1537 = vld [vmem:[%s1534 + $0x8] sm:$0xf]
      %v1538 = vld [vmem:[%s1534 + $0xc] sm:$0xf]
      %v1539 = vld [vmem:[%s1534 + $0x10] sm:$0xf]
      %v1540 = vld [vmem:[%s1534 + $0x14] sm:$0xf]
      %v1541 = vld [vmem:[%s1534 + $0x18] sm:$0xf]
      %v1542 = vld [vmem:[%s1534 + $0x1c] sm:$0xf]
      %v1543 = vld [vmem:[%s1534 + $0x20] sm:$0xf]
      %v1544 = vld [vmem:[%s1534 + $0x24] sm:$0xf]
      %v1545 = vld [vmem:[%s1534 + $0x28] sm:$0xf]
      %v1546 = vld [vmem:[%s1534 + $0x2c] sm:$0xf]
      %v1559 = vunpack.c.l.b16 %v1535
      %v1560 = vunpack.c.l.b16 %v1536
      %v1561 = vunpack.c.l.b16 %v1537
      %v1562 = vunpack.c.l.b16 %v1538
      %v1563 = vunpack.c.l.b16 %v1539
      %v1564 = vunpack.c.l.b16 %v1540
      %v1565 = vunpack.c.l.b16 %v1541
      %v1566 = vunpack.c.l.b16 %v1542
      %v1567 = vunpack.c.l.b16 %v1543
      %v1568 = vunpack.c.l.b16 %v1544
      %v1569 = vunpack.c.l.b16 %v1545
      %v1570 = vunpack.c.l.b16 %v1546
      %v1571 = vpack.c.b16 %v1560, %v1559
      %v1572 = vpack.c.b16 %v1562, %v1561
      %v1573 = vpack.c.b16 %v1564, %v1563
      %v1574 = vpack.c.b16 %v1566, %v1565
      %v1575 = vpack.c.b16 %v1568, %v1567
      %v1576 = vpack.c.b16 %v1570, %v1569
      %v1583 = vsel %vm1446, %v1394, 0
      %1585 = vmatprep.subr.bf16.mxu0 0
      %1586 = vmatpush1.bf16.msra.mxu0 %v1571
      %1587 = vmatprep.subr.bf16.mxu0 0
      %1588 = vmatpush1.bf16.msra.mxu0 %v1572
      %1589 = vmatprep.subr.bf16.mxu0 0
      %1590 = vmatpush1.bf16.msra.mxu0 %v1573
      %1591 = vmatprep.subr.bf16.mxu0 0
      %1592 = vmatpush1.bf16.msra.mxu0 %v1574
      %1593 = vmatprep.subr.bf16.mxu0 0
      %1594 = vmatpush1.bf16.msra.mxu0 %v1575
      %1595 = vmatprep.subr.bf16.mxu0 0
      %1596 = vmatpush1.bf16.msra.mxu0 %v1576
      %1597 = vmatprep.subr.bf16.mxu0 0
      %1598 = vmatpush1.bf16.msra.mxu0 0
      %1599 = vmatprep.subr.bf16.mxu0 0
      %1600 = vmatpush1.bf16.msra.mxu0 0
      %1601 = vmatprep.subr.bf16.mxu0 0
      %1602 = vmatpush1.bf16.msra.mxu0 0
      %1603 = vmatprep.subr.bf16.mxu0 0
      %1604 = vmatpush1.bf16.msra.mxu0 0
      %1605 = vmatprep.subr.bf16.mxu0 0
      %1606 = vmatpush1.bf16.msra.mxu0 0
      %1607 = vmatprep.subr.bf16.mxu0 0
      %1608 = vmatpush1.bf16.msra.mxu0 0
      %1609 = vmatprep.subr.bf16.mxu0 0
      %1610 = vmatpush1.bf16.msra.mxu0 0
      %1611 = vmatprep.subr.bf16.mxu0 0
      %1612 = vmatpush1.bf16.msra.mxu0 0
      %1613 = vmatprep.subr.bf16.mxu0 0
      %1614 = vmatpush1.bf16.msra.mxu0 0
      %1615 = vmatprep.subr.bf16.mxu0 0
      %1616 = vmatpush1.bf16.msra.mxu0 0
      %1617 = vmatprep.mubr.bf16.mxu0 0
      %1618 = vmatmul.mubr.bf16.gmra.mrb[0].mxu0 %v1449
      %v1619 = vpop.f32.mrb[0].mxu0
      %v1620 = vadd.f32 0.0, %v1619
      %v1621 = vpop.f32.mrb[0].mxu0
      %v1622 = vpop.f32.mrb[0].mxu0
      %v1623 = vadd.f32 0.0, %v1622
      %v1624 = vpop.f32.mrb[0].mxu0
      %1625 = vmatprep.mubr.bf16.mxu0 0
      %1626 = vmatmul.mubr.bf16.gmra.mrb[0].mxu0 %v1451
      %v1627 = vpop.f32.mrb[0].mxu0
      %v1628 = vadd.f32 0.0, %v1627
      %v1629 = vpop.f32.mrb[0].mxu0
      %v1630 = vpop.f32.mrb[0].mxu0
      %v1631 = vadd.f32 0.0, %v1630
      %v1632 = vpop.f32.mrb[0].mxu0
      %1633 = vmatprep.mubr.bf16.mxu0 0
      %1634 = vmatmul.mubr.bf16.gmra.mrb[0].mxu0 %v1453
      %v1635 = vpop.f32.mrb[0].mxu0
      %v1636 = vadd.f32 0.0, %v1635
      %v1637 = vpop.f32.mrb[0].mxu0
      %v1638 = vpop.f32.mrb[0].mxu0
      %v1639 = vadd.f32 0.0, %v1638
      %v1640 = vpop.f32.mrb[0].mxu0
      %1641 = vmatprep.mubr.bf16.mxu0 0
      %1642 = vmatmul.mubr.bf16.gmra.mrb[0].mxu0 %v1583
      %v1643 = vpop.f32.mrb[0].mxu0
      %v1644 = vadd.f32 0.0, %v1643
      %v1645 = vpop.f32.mrb[0].mxu0
      %v1646 = vpop.f32.mrb[0].mxu0
      %v1647 = vadd.f32 0.0, %v1646
      %v1648 = vpop.f32.mrb[0].mxu0
      %1649 = vdwg.mxu0
      %v1650 = vadd.f32 %v1526, %v1620
      %v1651 = vadd.f32 %v1527, %v1623
      %v1652 = vadd.f32 %v1528, %v1628
      %v1653 = vadd.f32 %v1529, %v1631
      %v1654 = vadd.f32 %v1530, %v1636
      %v1655 = vadd.f32 %v1531, %v1639
      %v1656 = vadd.f32 %v1532, %v1644
      %v1657 = vadd.f32 %v1533, %v1647
      %s1658 = scalar_lea.vmem %s7, 96
      %v1659 = vld [vmem:[%s1658] sm:$0xf]
      %v1660 = vld [vmem:[%s1658 + $0x4] sm:$0xf]
      %v1661 = vld [vmem:[%s1658 + $0x8] sm:$0xf]
      %v1662 = vld [vmem:[%s1658 + $0xc] sm:$0xf]
      %v1663 = vld [vmem:[%s1658 + $0x10] sm:$0xf]
      %v1664 = vld [vmem:[%s1658 + $0x14] sm:$0xf]
      %v1665 = vld [vmem:[%s1658 + $0x18] sm:$0xf]
      %v1666 = vld [vmem:[%s1658 + $0x1c] sm:$0xf]
      %v1667 = vld [vmem:[%s1658 + $0x20] sm:$0xf]
      %v1668 = vld [vmem:[%s1658 + $0x24] sm:$0xf]
      %v1669 = vld [vmem:[%s1658 + $0x28] sm:$0xf]
      %v1670 = vld [vmem:[%s1658 + $0x2c] sm:$0xf]
      %v1683 = vunpack.c.l.b16 %v1659
      %v1684 = vunpack.c.l.b16 %v1660
      %v1685 = vunpack.c.l.b16 %v1661
      %v1686 = vunpack.c.l.b16 %v1662
      %v1687 = vunpack.c.l.b16 %v1663
      %v1688 = vunpack.c.l.b16 %v1664
      %v1689 = vunpack.c.l.b16 %v1665
      %v1690 = vunpack.c.l.b16 %v1666
      %v1691 = vunpack.c.l.b16 %v1667
      %v1692 = vunpack.c.l.b16 %v1668
      %v1693 = vunpack.c.l.b16 %v1669
      %v1694 = vunpack.c.l.b16 %v1670
      %v1695 = vpack.c.b16 %v1684, %v1683
      %v1696 = vpack.c.b16 %v1686, %v1685
      %v1697 = vpack.c.b16 %v1688, %v1687
      %v1698 = vpack.c.b16 %v1690, %v1689
      %v1699 = vpack.c.b16 %v1692, %v1691
      %v1700 = vpack.c.b16 %v1694, %v1693
      %v1707 = vsel %vm1446, %v1396, 0
      %1709 = vmatprep.subr.bf16.mxu0 0
      %1710 = vmatpush1.bf16.msra.mxu0 %v1695
      %1711 = vmatprep.subr.bf16.mxu0 0
      %1712 = vmatpush1.bf16.msra.mxu0 %v1696
      %1713 = vmatprep.subr.bf16.mxu0 0
      %1714 = vmatpush1.bf16.msra.mxu0 %v1697
      %1715 = vmatprep.subr.bf16.mxu0 0
      %1716 = vmatpush1.bf16.msra.mxu0 %v1698
      %1717 = vmatprep.subr.bf16.mxu0 0
      %1718 = vmatpush1.bf16.msra.mxu0 %v1699
      %1719 = vmatprep.subr.bf16.mxu0 0
      %1720 = vmatpush1.bf16.msra.mxu0 %v1700
      %1721 = vmatprep.subr.bf16.mxu0 0
      %1722 = vmatpush1.bf16.msra.mxu0 0
      %1723 = vmatprep.subr.bf16.mxu0 0
      %1724 = vmatpush1.bf16.msra.mxu0 0
      %1725 = vmatprep.subr.bf16.mxu0 0
      %1726 = vmatpush1.bf16.msra.mxu0 0
      %1727 = vmatprep.subr.bf16.mxu0 0
      %1728 = vmatpush1.bf16.msra.mxu0 0
      %1729 = vmatprep.subr.bf16.mxu0 0
      %1730 = vmatpush1.bf16.msra.mxu0 0
      %1731 = vmatprep.subr.bf16.mxu0 0
      %1732 = vmatpush1.bf16.msra.mxu0 0
      %1733 = vmatprep.subr.bf16.mxu0 0
      %1734 = vmatpush1.bf16.msra.mxu0 0
      %1735 = vmatprep.subr.bf16.mxu0 0
      %1736 = vmatpush1.bf16.msra.mxu0 0
      %1737 = vmatprep.subr.bf16.mxu0 0
      %1738 = vmatpush1.bf16.msra.mxu0 0
      %1739 = vmatprep.subr.bf16.mxu0 0
      %1740 = vmatpush1.bf16.msra.mxu0 0
      %1741 = vmatprep.mubr.bf16.mxu0 0
      %1742 = vmatmul.mubr.bf16.gmra.mrb[0].mxu0 %v1451
      %v1743 = vpop.f32.mrb[0].mxu0
      %v1744 = vadd.f32 0.0, %v1743
      %v1745 = vpop.f32.mrb[0].mxu0
      %v1746 = vpop.f32.mrb[0].mxu0
      %v1747 = vadd.f32 0.0, %v1746
      %v1748 = vpop.f32.mrb[0].mxu0
      %1749 = vmatprep.mubr.bf16.mxu0 0
      %1750 = vmatmul.mubr.bf16.gmra.mrb[0].mxu0 %v1453
      %v1751 = vpop.f32.mrb[0].mxu0
      %v1752 = vadd.f32 0.0, %v1751
      %v1753 = vpop.f32.mrb[0].mxu0
      %v1754 = vpop.f32.mrb[0].mxu0
      %v1755 = vadd.f32 0.0, %v1754
      %v1756 = vpop.f32.mrb[0].mxu0
      %1757 = vmatprep.mubr.bf16.mxu0 0
      %1758 = vmatmul.mubr.bf16.gmra.mrb[0].mxu0 %v1583
      %v1759 = vpop.f32.mrb[0].mxu0
      %v1760 = vadd.f32 0.0, %v1759
      %v1761 = vpop.f32.mrb[0].mxu0
      %v1762 = vpop.f32.mrb[0].mxu0
      %v1763 = vadd.f32 0.0, %v1762
      %v1764 = vpop.f32.mrb[0].mxu0
      %1765 = vmatprep.mubr.bf16.mxu0 0
      %1766 = vmatmul.mubr.bf16.gmra.mrb[0].mxu0 %v1707
      %v1767 = vpop.f32.mrb[0].mxu0
      %v1768 = vadd.f32 0.0, %v1767
      %v1769 = vpop.f32.mrb[0].mxu0
      %v1770 = vpop.f32.mrb[0].mxu0
      %v1771 = vadd.f32 0.0, %v1770
      %v1772 = vpop.f32.mrb[0].mxu0
      %1773 = vdwg.mxu0
      %v1774 = vadd.f32 %v1650, %v1744
      %v1775 = vadd.f32 %v1651, %v1747
      %v1776 = vadd.f32 %v1652, %v1752
      %v1777 = vadd.f32 %v1653, %v1755
      %v1778 = vadd.f32 %v1654, %v1760
      %v1779 = vadd.f32 %v1655, %v1763
      %v1780 = vadd.f32 %v1656, %v1768
      %v1781 = vadd.f32 %v1657, %v1771
      %v1782 = vadd.f32 %v501, %v1774
      %v1783 = vadd.f32 %v502, %v1775
      %v1784 = vadd.f32 %v503, %v1776
      %v1785 = vadd.f32 %v504, %v1777
      %v1786 = vadd.f32 %v505, %v1778
      %v1787 = vadd.f32 %v506, %v1779
      %v1788 = vadd.f32 %v507, %v1780
      %v1789 = vadd.f32 %v508, %v1781
      %1790 = vst.msk [vmem:[%s498] sm:$0xff] %vm555, %v1782
      %1791 = vst.msk [vmem:[%s498 + $0x8] sm:$0xff] %vm555, %v1783
      %1792 = vst.msk [vmem:[%s498 + $0x10] sm:$0xff] %vm555, %v1784
      %1793 = vst.msk [vmem:[%s498 + $0x18] sm:$0xff] %vm555, %v1785
      %1794 = vst.msk [vmem:[%s498 + $0x20] sm:$0xff] %vm555, %v1786
      %1795 = vst.msk [vmem:[%s498 + $0x28] sm:$0xff] %vm555, %v1787
      %1796 = vst.msk [vmem:[%s498 + $0x30] sm:$0xff] %vm555, %v1788
      %1797 = vst.msk [vmem:[%s498 + $0x38] sm:$0xff] %vm555, %v1789
      %s1798 = smul.u32 8, %s25
      %p1799 = scmp.lt.s32.totalorder %s24, 1
      %s1800 = scalar_select %p1799, %s24, 1
      %p1801 = scmp.lt.s32.totalorder %s1798, 31
      %s1802 = scalar_select %p1801, %s1798, 31
      %s1803 = smul.addr %s1800, 32
      %s1804 = sadd.s32 %s1802, %s1803
      %s1805 = smul.addr %s1804, 8
      %s1806 = scalar_lea.vmem %s9, %s1805
      // Predicated region
      $region57: #{tpu_custom_call.1} parent=55 // pred_check
        %p1807 = pneg %p278
      $region58: #{tpu_custom_call.1} parent=55 // pred_check_branch
        %1809 = sbr.rel (%p1807) target = $region60
      $region59: #{tpu_custom_call.1} parent=55 // pred_region
        %s1810 = smul.u32 8, %s25
      $region60: #{tpu_custom_call.1} parent=55 // pred_fallthru
        _
    $region56: #{tpu_custom_call.1} parent=5 // pred_fallthru
      _
    %p1811 = scmp.le.s32.totalorder 2, %s15
    // Predicated region
    $region61: #{tpu_custom_call.1} parent=5 // pred_check
      %p1812 = pneg %p1811
    $region62: #{tpu_custom_call.1} parent=5 // pred_check_branch
      %1814 = sbr.rel (%p1812) target = $region64
    $region63: #{tpu_custom_call.1} parent=5 // pred_region
      %s1815 = ssub.s32 %s15, 2
      // Predicated region
      $region65: #{tpu_custom_call.1} parent=63 // pred_check
        %p1816 = pneg %p284
      $region66: #{tpu_custom_call.1} parent=63 // pred_check_branch
        %1818 = sbr.rel (%p1816) target = $region68
      $region67: #{tpu_custom_call.1} parent=63 // pred_region
        %s1819 = smul.u32 8, %s27
        %p1820 = scmp.lt.s32.totalorder %s26, 1
        %s1821 = scalar_select %p1820, %s26, 1
        %p1822 = scmp.lt.s32.totalorder %s1819, 31
        %s1823 = scalar_select %p1822, %s1819, 31
        %s1824 = smul.addr %s1821, 32
        %s1825 = sadd.s32 %s1823, %s1824
        %s1826 = smul.addr %s1825, 8
        %s1827 = scalar_lea.vmem %s9, %s1826
      $region68: #{tpu_custom_call.1} parent=63 // pred_fallthru
        _
    $region64: #{tpu_custom_call.1} parent=5 // pred_fallthru
      _
  $region6: #{tpu_custom_call.1} parent=0 // loop_footer
    %s19 = sadd.s32 1, %s15
  $region7: #{tpu_custom_call.1} parent=0 // loop_footer_branch
    %14 = sbr.rel target = $region3
  $region8: #{tpu_custom_call.1} parent=0 // loop_exit
    _

</llo_original>
